<compile_context>
chip_gen: v6e
topology: v6e:2x2x1
jax: 0.10.0
libtpu: 0.0.40
codegen_flags: <defaults>
</compile_context>

<pallas_src>
import functools

import jax
import jax.numpy as jnp
from jax import lax
from jax.experimental import pallas as pl
from jax.experimental.pallas import tpu as pltpu


# ---------------------------------------------------------------------------
# Fused kernel: qkv projection -> linear attention (all heads) -> out projection
# One grid step per batch element.  Refs:
#   x_ref    : (1, C, N)        input image, channel-major, N = H*W in lanes
#   wqkv_ref : (3*heads*D, C)   to_qkv conv weight (no bias)
#   wout_ref : (C, heads*D)     to_out conv weight
#   bout_ref : (C, 1)           to_out conv bias
#   o_ref    : (1, C, N)        output
# ---------------------------------------------------------------------------
def _fused_linear_attention_kernel(x_ref, wqkv_ref, wout_ref, bout_ref, o_ref,
                                   *, heads, dim_head):
    x = x_ref[0].astype(jnp.float32)                 # (C, N)
    w_qkv = wqkv_ref[...].astype(jnp.float32)        # (3*hidden, C)
    w_out = wout_ref[...].astype(jnp.float32)        # (C, hidden)
    bias = bout_ref[...].astype(jnp.float32)         # (C, 1)

    C, N = x.shape
    D = dim_head
    hidden = heads * D

    # 1x1 conv as channel-major matmul: (3*hidden, C) @ (C, N) -> (3*hidden, N)
    qkv = lax.dot_general(w_qkv, x, (((1,), (0,)), ((), ())),
                          preferred_element_type=jnp.float32)

    acc = jnp.zeros((C, N), jnp.float32)

    # Channel layout of qkv rows matches rearrange 'b (qkv heads c) h w -> ...':
    # rows [0, hidden) = q, [hidden, 2*hidden) = k, [2*hidden, 3*hidden) = v,
    # and within each, head-major then dim_head.
    for hidx in range(heads):
        lo = hidx * D
        q = qkv[lo:lo + D, :]                              # (D, N)
        k = qkv[hidden + lo:hidden + lo + D, :]            # (D, N)
        v = qkv[2 * hidden + lo:2 * hidden + lo + D, :]    # (D, N)

        # softmax over the spatial axis n (numerically stable, f32)
        k_max = jnp.max(k, axis=-1, keepdims=True)
        k_exp = jnp.exp(k - k_max)
        inv_sum = pl.reciprocal(jnp.sum(k_exp, axis=-1, keepdims=True), approx=True)
        k_soft = k_exp * inv_sum

        # context[d, e] = sum_n k_soft[d, n] * v[e, n]   (contract lane axis of both)
        ctx = lax.dot_general(k_soft, v, (((1,), (1,)), ((), ())),
                              preferred_element_type=jnp.float32)       # (D, D)
        # out[e, n] = sum_d context[d, e] * q[d, n]      (contract axis 0 of both)
        out_h = lax.dot_general(ctx, q, (((0,), (0,)), ((), ())),
                                preferred_element_type=jnp.float32)     # (D, N)

        # fold this head straight into the output 1x1 conv: acc += W_out[:, head] @ out_h
        w_out_h = w_out[:, lo:lo + D]                                   # (C, D)
        acc = acc + lax.dot_general(w_out_h, out_h, (((1,), (0,)), ((), ())),
                                    preferred_element_type=jnp.float32)  # (C, N)

    o_ref[0] = (acc + bias).astype(o_ref.dtype)


# ---------------------------------------------------------------------------
# Forward pass.  Params follow the PyTorch module:
#   w_qkv : (3*heads*dim_head, dim, 1, 1)   Conv2d(dim, hidden*3, 1, bias=False)
#   w_out : (dim, heads*dim_head, 1, 1)     Conv2d(hidden, dim, 1)
#   b_out : (dim,)
# ---------------------------------------------------------------------------
def linear_attention_forward(x, params, heads=4, dim_head=32):
    b, c, h, w = x.shape
    n = h * w
    hidden = heads * dim_head

    # NCHW -> (B, C, N) is a free reshape (spatial dims are already contiguous last).
    x_r = x.reshape(b, c, n)
    w_qkv = params["w_qkv"].reshape(3 * hidden, c)      # (3*hidden, C), channel-major
    w_out = params["w_out"].reshape(c, hidden)          # (C, hidden)
    b_out = params["b_out"].reshape(c, 1)

    kernel = functools.partial(_fused_linear_attention_kernel,
                               heads=heads, dim_head=dim_head)

    y = pl.pallas_call(
        kernel,
        out_shape=jax.ShapeDtypeStruct((b, c, n), x.dtype),
        grid=(b,),
        in_specs=[
            pl.BlockSpec((1, c, n), lambda i: (i, 0, 0)),
            pl.BlockSpec((3 * hidden, c), lambda i: (0, 0)),
            pl.BlockSpec((c, hidden), lambda i: (0, 0)),
            pl.BlockSpec((c, 1), lambda i: (0, 0)),
        ],
        out_specs=pl.BlockSpec((1, c, n), lambda i: (i, 0, 0)),
        compiler_params=pltpu.CompilerParams(
            dimension_semantics=("parallel",)),   # shard batches across TCs (v7x)
    )(x_r, w_qkv, w_out, b_out)

    return y.reshape(b, c, h, w)


# ---------------------------------------------------------------------------
# Pure-JAX reference for correctness checking
# ---------------------------------------------------------------------------
def linear_attention_reference(x, params, heads=4, dim_head=32):
    b, c, h, w = x.shape
    n = h * w
    hidden = heads * dim_head
    qkv = jnp.einsum('bchw,oc->bohw', x, params["w_qkv"].reshape(3 * hidden, c))
    qkv = qkv.reshape(b, 3, heads, dim_head, n)
    q, k, v = qkv[:, 0], qkv[:, 1], qkv[:, 2]
    k = jax.nn.softmax(k, axis=-1)
    context = jnp.einsum('bhdn,bhen->bhde', k, v)
    out = jnp.einsum('bhde,bhdn->bhen', context, q)
    out = out.reshape(b, hidden, h, w)
    y = jnp.einsum('bchw,oc->bohw', out, params["w_out"].reshape(c, hidden))
    return y + params["b_out"][None, :, None, None]


if __name__ == "__main__":
    dim, heads, dim_head = 4, 4, 32
    hidden = heads * dim_head
    b, h, w = 2, 16, 16

    key = jax.random.PRNGKey(0)
    kx, kq, ko, kb = jax.random.split(key, 4)

    x = jax.random.normal(kx, (b, dim, h, w), dtype=jnp.float32)
    params = {
        # Conv2d(dim, hidden*3, 1, bias=False): weight (3*hidden, dim, 1, 1)
        "w_qkv": 0.05 * jax.random.normal(kq, (3 * hidden, dim, 1, 1), jnp.float32),
        # Conv2d(hidden, dim, 1): weight (dim, hidden, 1, 1), bias (dim,)
        "w_out": 0.05 * jax.random.normal(ko, (dim, hidden, 1, 1), jnp.float32),
        "b_out": 0.05 * jax.random.normal(kb, (dim,), jnp.float32),
    }

    y = linear_attention_forward(x, params, heads=heads, dim_head=dim_head)
    y = jax.block_until_ready(y)

    y_ref = linear_attention_reference(x, params, heads=heads, dim_head=dim_head)
    assert y.shape == (b, dim, h, w)
    # tolerance slightly loosened vs pure-f32 to accommodate the EUP approximate
    # reciprocal used for the softmax normalization
    assert jnp.allclose(y, y_ref, atol=1e-3, rtol=1e-3), "mismatch vs reference"

    print("KERNEL_OK")
</pallas_src>

<mosaic_0001>
module attributes {stable_mosaic.version = 11 : i64} {
  func.func @_fused_linear_attention_kernel(%arg0: i32, %arg1: memref<1x4x256xf32, #tpu.memory_space<vmem>>, %arg2: memref<384x4xf32, #tpu.memory_space<vmem>>, %arg3: memref<4x128xf32, #tpu.memory_space<vmem>>, %arg4: memref<4x1xf32, #tpu.memory_space<vmem>>, %arg5: memref<1x4x256xf32, #tpu.memory_space<vmem>>) attributes {dimension_semantics = [#tpu.dimension_semantics<parallel>], iteration_bounds = array<i64: 2>, scalar_prefetch = 0 : i64, scratch_operands = 0 : i64, tpu.core_type = #tpu.core_type<tc>, window_params = [{transform_indices = @transform_0, window_bounds = array<i64: 1, 4, 256>}, {pipeline_mode = #tpu.pipeline_mode<synchronous>, transform_indices = @transform_1, window_bounds = array<i64: 384, 4>}, {pipeline_mode = #tpu.pipeline_mode<synchronous>, transform_indices = @transform_2, window_bounds = array<i64: 4, 128>}, {pipeline_mode = #tpu.pipeline_mode<synchronous>, transform_indices = @transform_3, window_bounds = array<i64: 4, 1>}, {transform_indices = @transform_4, window_bounds = array<i64: 1, 4, 256>}]} {
    %c0 = arith.constant 0 : index
    %c0_0 = arith.constant 0 : index
    %c0_1 = arith.constant 0 : index
    %0 = vector.load %arg1[%c0, %c0_0, %c0_1] : memref<1x4x256xf32, #tpu.memory_space<vmem>>, vector<1x4x256xf32>
    %1 = vector.shape_cast %0 : vector<1x4x256xf32> to vector<4x256xf32>
    %c0_2 = arith.constant 0 : index
    %c0_3 = arith.constant 0 : index
    %2 = vector.load %arg2[%c0_2, %c0_3] : memref<384x4xf32, #tpu.memory_space<vmem>>, vector<384x4xf32>
    %c0_4 = arith.constant 0 : index
    %c0_5 = arith.constant 0 : index
    %3 = vector.load %arg3[%c0_4, %c0_5] : memref<4x128xf32, #tpu.memory_space<vmem>>, vector<4x128xf32>
    %c0_6 = arith.constant 0 : index
    %c0_7 = arith.constant 0 : index
    %4 = vector.load %arg4[%c0_6, %c0_7] : memref<4x1xf32, #tpu.memory_space<vmem>>, vector<4x1xf32>
    %cst = arith.constant dense<0.000000e+00> : vector<384x256xf32>
    %5 = tpu.matmul %2, %1, %cst {dimension_numbers = #tpu.dot_dimension_numbers<[1], [0], [0], [1], [0, 0, 1, 1], [], []>} : vector<384x4xf32>, vector<4x256xf32>, vector<384x256xf32> -> vector<384x256xf32>
    %cst_8 = arith.constant 0.000000e+00 : f32
    %6 = vector.broadcast %cst_8 : f32 to vector<4x256xf32>
    %7 = vector.extract_strided_slice %5 {offsets = [0, 0], sizes = [32, 256], strides = [1, 1]} : vector<384x256xf32> to vector<32x256xf32>
    %8 = vector.extract_strided_slice %5 {offsets = [128, 0], sizes = [32, 256], strides = [1, 1]} : vector<384x256xf32> to vector<32x256xf32>
    %9 = vector.extract_strided_slice %5 {offsets = [256, 0], sizes = [32, 256], strides = [1, 1]} : vector<384x256xf32> to vector<32x256xf32>
    %cst_9 = arith.constant dense<0xFF800000> : vector<32xf32>
    %10 = vector.multi_reduction <maximumf>, %8, %cst_9 [1] : vector<32x256xf32> to vector<32xf32>
    %11 = vector.shape_cast %10 : vector<32xf32> to vector<32x1xf32>
    %12 = vector.broadcast %11 : vector<32x1xf32> to vector<32x256xf32>
    %13 = arith.subf %8, %12 : vector<32x256xf32>
    %14 = math.exp %13 : vector<32x256xf32>
    %cst_10 = arith.constant dense<0.000000e+00> : vector<32xf32>
    %15 = vector.multi_reduction <add>, %14, %cst_10 [1] : vector<32x256xf32> to vector<32xf32>
    %16 = vector.shape_cast %15 : vector<32xf32> to vector<32x1xf32>
    %17 = tpu.reciprocal %16 {approx = true} : vector<32x1xf32> -> vector<32x1xf32>
    %18 = vector.broadcast %17 : vector<32x1xf32> to vector<32x256xf32>
    %19 = arith.mulf %14, %18 : vector<32x256xf32>
    %cst_11 = arith.constant dense<0.000000e+00> : vector<32x32xf32>
    %20 = tpu.matmul %19, %9, %cst_11 {dimension_numbers = #tpu.dot_dimension_numbers<[1], [1], [0], [0], [0, 0, 1, 0], [], []>} : vector<32x256xf32>, vector<32x256xf32>, vector<32x32xf32> -> vector<32x32xf32>
    %cst_12 = arith.constant dense<0.000000e+00> : vector<32x256xf32>
    %21 = tpu.matmul %20, %7, %cst_12 {dimension_numbers = #tpu.dot_dimension_numbers<[0], [0], [1], [1], [0, 1, 1, 1], [], []>} : vector<32x32xf32>, vector<32x256xf32>, vector<32x256xf32> -> vector<32x256xf32>
    %22 = vector.extract_strided_slice %3 {offsets = [0, 0], sizes = [4, 32], strides = [1, 1]} : vector<4x128xf32> to vector<4x32xf32>
    %cst_13 = arith.constant dense<0.000000e+00> : vector<4x256xf32>
    %23 = tpu.matmul %22, %21, %cst_13 {dimension_numbers = #tpu.dot_dimension_numbers<[1], [0], [0], [1], [0, 0, 1, 1], [], []>} : vector<4x32xf32>, vector<32x256xf32>, vector<4x256xf32> -> vector<4x256xf32>
    %24 = arith.addf %6, %23 : vector<4x256xf32>
    %25 = vector.extract_strided_slice %5 {offsets = [32, 0], sizes = [32, 256], strides = [1, 1]} : vector<384x256xf32> to vector<32x256xf32>
    %26 = vector.extract_strided_slice %5 {offsets = [160, 0], sizes = [32, 256], strides = [1, 1]} : vector<384x256xf32> to vector<32x256xf32>
    %27 = vector.extract_strided_slice %5 {offsets = [288, 0], sizes = [32, 256], strides = [1, 1]} : vector<384x256xf32> to vector<32x256xf32>
    %cst_14 = arith.constant dense<0xFF800000> : vector<32xf32>
    %28 = vector.multi_reduction <maximumf>, %26, %cst_14 [1] : vector<32x256xf32> to vector<32xf32>
    %29 = vector.shape_cast %28 : vector<32xf32> to vector<32x1xf32>
    %30 = vector.broadcast %29 : vector<32x1xf32> to vector<32x256xf32>
    %31 = arith.subf %26, %30 : vector<32x256xf32>
    %32 = math.exp %31 : vector<32x256xf32>
    %cst_15 = arith.constant dense<0.000000e+00> : vector<32xf32>
    %33 = vector.multi_reduction <add>, %32, %cst_15 [1] : vector<32x256xf32> to vector<32xf32>
    %34 = vector.shape_cast %33 : vector<32xf32> to vector<32x1xf32>
    %35 = tpu.reciprocal %34 {approx = true} : vector<32x1xf32> -> vector<32x1xf32>
    %36 = vector.broadcast %35 : vector<32x1xf32> to vector<32x256xf32>
    %37 = arith.mulf %32, %36 : vector<32x256xf32>
    %cst_16 = arith.constant dense<0.000000e+00> : vector<32x32xf32>
    %38 = tpu.matmul %37, %27, %cst_16 {dimension_numbers = #tpu.dot_dimension_numbers<[1], [1], [0], [0], [0, 0, 1, 0], [], []>} : vector<32x256xf32>, vector<32x256xf32>, vector<32x32xf32> -> vector<32x32xf32>
    %cst_17 = arith.constant dense<0.000000e+00> : vector<32x256xf32>
    %39 = tpu.matmul %38, %25, %cst_17 {dimension_numbers = #tpu.dot_dimension_numbers<[0], [0], [1], [1], [0, 1, 1, 1], [], []>} : vector<32x32xf32>, vector<32x256xf32>, vector<32x256xf32> -> vector<32x256xf32>
    %40 = vector.extract_strided_slice %3 {offsets = [0, 32], sizes = [4, 32], strides = [1, 1]} : vector<4x128xf32> to vector<4x32xf32>
    %cst_18 = arith.constant dense<0.000000e+00> : vector<4x256xf32>
    %41 = tpu.matmul %40, %39, %cst_18 {dimension_numbers = #tpu.dot_dimension_numbers<[1], [0], [0], [1], [0, 0, 1, 1], [], []>} : vector<4x32xf32>, vector<32x256xf32>, vector<4x256xf32> -> vector<4x256xf32>
    %42 = arith.addf %24, %41 : vector<4x256xf32>
    %43 = vector.extract_strided_slice %5 {offsets = [64, 0], sizes = [32, 256], strides = [1, 1]} : vector<384x256xf32> to vector<32x256xf32>
    %44 = vector.extract_strided_slice %5 {offsets = [192, 0], sizes = [32, 256], strides = [1, 1]} : vector<384x256xf32> to vector<32x256xf32>
    %45 = vector.extract_strided_slice %5 {offsets = [320, 0], sizes = [32, 256], strides = [1, 1]} : vector<384x256xf32> to vector<32x256xf32>
    %cst_19 = arith.constant dense<0xFF800000> : vector<32xf32>
    %46 = vector.multi_reduction <maximumf>, %44, %cst_19 [1] : vector<32x256xf32> to vector<32xf32>
    %47 = vector.shape_cast %46 : vector<32xf32> to vector<32x1xf32>
    %48 = vector.broadcast %47 : vector<32x1xf32> to vector<32x256xf32>
    %49 = arith.subf %44, %48 : vector<32x256xf32>
    %50 = math.exp %49 : vector<32x256xf32>
    %cst_20 = arith.constant dense<0.000000e+00> : vector<32xf32>
    %51 = vector.multi_reduction <add>, %50, %cst_20 [1] : vector<32x256xf32> to vector<32xf32>
    %52 = vector.shape_cast %51 : vector<32xf32> to vector<32x1xf32>
    %53 = tpu.reciprocal %52 {approx = true} : vector<32x1xf32> -> vector<32x1xf32>
    %54 = vector.broadcast %53 : vector<32x1xf32> to vector<32x256xf32>
    %55 = arith.mulf %50, %54 : vector<32x256xf32>
    %cst_21 = arith.constant dense<0.000000e+00> : vector<32x32xf32>
    %56 = tpu.matmul %55, %45, %cst_21 {dimension_numbers = #tpu.dot_dimension_numbers<[1], [1], [0], [0], [0, 0, 1, 0], [], []>} : vector<32x256xf32>, vector<32x256xf32>, vector<32x32xf32> -> vector<32x32xf32>
    %cst_22 = arith.constant dense<0.000000e+00> : vector<32x256xf32>
    %57 = tpu.matmul %56, %43, %cst_22 {dimension_numbers = #tpu.dot_dimension_numbers<[0], [0], [1], [1], [0, 1, 1, 1], [], []>} : vector<32x32xf32>, vector<32x256xf32>, vector<32x256xf32> -> vector<32x256xf32>
    %58 = vector.extract_strided_slice %3 {offsets = [0, 64], sizes = [4, 32], strides = [1, 1]} : vector<4x128xf32> to vector<4x32xf32>
    %cst_23 = arith.constant dense<0.000000e+00> : vector<4x256xf32>
    %59 = tpu.matmul %58, %57, %cst_23 {dimension_numbers = #tpu.dot_dimension_numbers<[1], [0], [0], [1], [0, 0, 1, 1], [], []>} : vector<4x32xf32>, vector<32x256xf32>, vector<4x256xf32> -> vector<4x256xf32>
    %60 = arith.addf %42, %59 : vector<4x256xf32>
    %61 = vector.extract_strided_slice %5 {offsets = [96, 0], sizes = [32, 256], strides = [1, 1]} : vector<384x256xf32> to vector<32x256xf32>
    %62 = vector.extract_strided_slice %5 {offsets = [224, 0], sizes = [32, 256], strides = [1, 1]} : vector<384x256xf32> to vector<32x256xf32>
    %63 = vector.extract_strided_slice %5 {offsets = [352, 0], sizes = [32, 256], strides = [1, 1]} : vector<384x256xf32> to vector<32x256xf32>
    %cst_24 = arith.constant dense<0xFF800000> : vector<32xf32>
    %64 = vector.multi_reduction <maximumf>, %62, %cst_24 [1] : vector<32x256xf32> to vector<32xf32>
    %65 = vector.shape_cast %64 : vector<32xf32> to vector<32x1xf32>
    %66 = vector.broadcast %65 : vector<32x1xf32> to vector<32x256xf32>
    %67 = arith.subf %62, %66 : vector<32x256xf32>
    %68 = math.exp %67 : vector<32x256xf32>
    %cst_25 = arith.constant dense<0.000000e+00> : vector<32xf32>
    %69 = vector.multi_reduction <add>, %68, %cst_25 [1] : vector<32x256xf32> to vector<32xf32>
    %70 = vector.shape_cast %69 : vector<32xf32> to vector<32x1xf32>
    %71 = tpu.reciprocal %70 {approx = true} : vector<32x1xf32> -> vector<32x1xf32>
    %72 = vector.broadcast %71 : vector<32x1xf32> to vector<32x256xf32>
    %73 = arith.mulf %68, %72 : vector<32x256xf32>
    %cst_26 = arith.constant dense<0.000000e+00> : vector<32x32xf32>
    %74 = tpu.matmul %73, %63, %cst_26 {dimension_numbers = #tpu.dot_dimension_numbers<[1], [1], [0], [0], [0, 0, 1, 0], [], []>} : vector<32x256xf32>, vector<32x256xf32>, vector<32x32xf32> -> vector<32x32xf32>
    %cst_27 = arith.constant dense<0.000000e+00> : vector<32x256xf32>
    %75 = tpu.matmul %74, %61, %cst_27 {dimension_numbers = #tpu.dot_dimension_numbers<[0], [0], [1], [1], [0, 1, 1, 1], [], []>} : vector<32x32xf32>, vector<32x256xf32>, vector<32x256xf32> -> vector<32x256xf32>
    %76 = vector.extract_strided_slice %3 {offsets = [0, 96], sizes = [4, 32], strides = [1, 1]} : vector<4x128xf32> to vector<4x32xf32>
    %cst_28 = arith.constant dense<0.000000e+00> : vector<4x256xf32>
    %77 = tpu.matmul %76, %75, %cst_28 {dimension_numbers = #tpu.dot_dimension_numbers<[1], [0], [0], [1], [0, 0, 1, 1], [], []>} : vector<4x32xf32>, vector<32x256xf32>, vector<4x256xf32> -> vector<4x256xf32>
    %78 = arith.addf %60, %77 : vector<4x256xf32>
    %79 = vector.broadcast %4 : vector<4x1xf32> to vector<4x256xf32>
    %80 = arith.addf %78, %79 : vector<4x256xf32>
    %c0_29 = arith.constant 0 : index
    %c0_30 = arith.constant 0 : index
    %c0_31 = arith.constant 0 : index
    %81 = vector.load %arg5[%c0_29, %c0_30, %c0_31] : memref<1x4x256xf32, #tpu.memory_space<vmem>>, vector<1x4x256xf32>
    %82 = vector.shape_cast %81 : vector<1x4x256xf32> to vector<4x256xf32>
    %83 = vector.shape_cast %80 : vector<4x256xf32> to vector<1x4x256xf32>
    tpu.vector_store %arg5[%c0_29, %c0_30, %c0_31], %83 {strides = array<i32>} : memref<1x4x256xf32, #tpu.memory_space<vmem>>, vector<1x4x256xf32>,
    return
  }
  func.func @transform_0(%arg0: i32) -> (i32, i32, i32) {
    %c0_i32 = arith.constant 0 : i32
    %c0_i32_0 = arith.constant 0 : i32
    %c0_i32_1 = arith.constant 0 : i32
    return %arg0, %c0_i32, %c0_i32_0 : i32, i32, i32
  }
  func.func @transform_1(%arg0: i32) -> (i32, i32) {
    %c0_i32 = arith.constant 0 : i32
    %c0_i32_0 = arith.constant 0 : i32
    %c0_i32_1 = arith.constant 0 : i32
    return %c0_i32, %c0_i32_0 : i32, i32
  }
  func.func @transform_2(%arg0: i32) -> (i32, i32) {
    %c0_i32 = arith.constant 0 : i32
    %c0_i32_0 = arith.constant 0 : i32
    %c0_i32_1 = arith.constant 0 : i32
    return %c0_i32, %c0_i32_0 : i32, i32
  }
  func.func @transform_3(%arg0: i32) -> (i32, i32) {
    %c0_i32 = arith.constant 0 : i32
    %c0_i32_0 = arith.constant 0 : i32
    %c0_i32_1 = arith.constant 0 : i32
    return %c0_i32, %c0_i32_0 : i32, i32
  }
  func.func @transform_4(%arg0: i32) -> (i32, i32, i32) {
    %c0_i32 = arith.constant 0 : i32
    %c0_i32_0 = arith.constant 0 : i32
    %c0_i32_1 = arith.constant 0 : i32
    return %arg0, %c0_i32, %c0_i32_0 : i32, i32, i32
  }
}

</mosaic_0001>

<llo_original>
// kernel: tpu_custom_call.1
$region0: #{tpu_custom_call.1}
  #allocation0 [shape = 'u32[]', space=smem, size = 0x4, offset = 0x4, fixed_abs, tag = 'smem constant byte address 0x4 - core index']
  #allocation1 [shape = 'u32[144,128]{1,0:T(1,128)}', space=vmem, size = 0x12000, scoped, tag = 'internal scratch']
  %s0 = inlined_call_operand.vmem [shape: f32[2,4,256], index: 0, kind: input, shape index: {}]
  %s1 = inlined_call_operand.vmem [shape: f32[384,4], index: 1, kind: input, shape index: {}]
  %s2 = inlined_call_operand.vmem [shape: f32[4,128], index: 2, kind: input, shape index: {}]
  %s3 = inlined_call_operand.vmem [shape: f32[4,1], index: 3, kind: input, shape index: {}]
  %s4 = inlined_call_operand.hbm [shape: f32[2,4,256], index: 4, kind: output, shape index: {}]
  %s5 = sld [smem:[#allocation0]]
  $region49: #{tpu_custom_call.1} parent=0
    _
  %s7 = ssub.s32 1, %s5
  %s8 = scalar_select 0, %s7, %s5
  $region1: #{tpu_custom_call.1} parent=0
    #allocation2 [shape = 'u8[8192]{0}', space=vmem, size = 0x2000, scoped, tag = 'output window, operand 0']
    #allocation3 [shape = 's32[2]{0}', space=sflag, size = 0x8, scoped, tag = 'scoped memory for tpu_custom_call.1']
    %9 = vsyncpa [#allocation3], 0
    %s10 = scalar_lea.sflag [#allocation3], 1
    %11 = vsyncpa %s10, 0
    loop: start=0, step=1, limit=4
    $region2: #{tpu_custom_call.1} parent=1 // loop_pre_header
      _
    $region3: #{tpu_custom_call.1} parent=1 // loop_header
      %s13 = sphi 0, %s17
      %p14 = scmp.ge.s32.totalorder %s13, 4
      %s23 = sphi 0, %s25
      %s26 = sphi 0, %s23
      %s27 = sphi 0, %s26
      %s43 = sphi 0, %s27
      %s47 = sphi 0, %s47
      %s49 = sphi 0, %s47
      %s50 = sphi 0, %s49
      %s64 = sphi 0, %s50
      %s68 = sphi 0, %s68
      %s70 = sphi 0, %s68
      %s71 = sphi 0, %s70
      %s85 = sphi 0, %s71
      %s89 = sphi 0, %s89
      %s91 = sphi 0, %s89
      %s92 = sphi 0, %s91
      %s106 = sphi 0, %s92
      %s112 = sphi 0, %s114
      %s115 = sphi 0, %s112
      %s116 = sphi 0, %s115
      %s132 = sphi 0, %s116
    $region4: #{tpu_custom_call.1} parent=1 // loop_header_branch
      %16 = sbr.rel (%p14) target = $region8
    $region5: #{tpu_custom_call.1} parent=1 // loop_body
      %s18 = ssub.s32 %s13, 1
      %s19 = ssub.s32 %s13, 2
      %s20 = sadd.s32 %s13, 1
      %s21 = ssub.s32 %s13, %s20
      %p22 = scmp.eq.s32.totalorder %s21, 0
      %s24 = sadd.s32 %s23, 1
      %s25 = scalar_select %p22, %s23, %s24
      %p28 = pneg %p22
      %p29 = scmp.eq.s32.totalorder %s13, 1
      %p30 = por %p28, %p29
      %p31 = scmp.ne.s32.totalorder %s23, %s26
      %p32 = scmp.eq.s32.totalorder %s13, 0
      %p33 = por %p31, %p32
      %p34 = scmp.ne.s32.totalorder %s23, %s26
      %p35 = scmp.eq.s32.totalorder %s18, 1
      %p36 = por %p34, %p35
      %p37 = scmp.ne.s32.totalorder %s26, %s27
      %p38 = scmp.eq.s32.totalorder %s18, 0
      %p39 = por %p37, %p38
      %p40 = scmp.ne.s32.totalorder %s26, %s27
      %p41 = scmp.eq.s32.totalorder %s19, 1
      %p42 = por %p40, %p41
      %p44 = scmp.ne.s32.totalorder %s27, %s43
      %p45 = scmp.eq.s32.totalorder %s19, 0
      %p46 = por %p44, %p45
      %s48 = sadd.s32 %s47, 1
      %p51 = scmp.eq.s32.totalorder %s13, 1
      %p52 = scmp.ne.s32.totalorder %s47, %s49
      %p53 = scmp.eq.s32.totalorder %s13, 0
      %p54 = por %p52, %p53
      %p55 = scmp.ne.s32.totalorder %s47, %s49
      %p56 = scmp.eq.s32.totalorder %s18, 1
      %p57 = por %p55, %p56
      %p58 = scmp.ne.s32.totalorder %s49, %s50
      %p59 = scmp.eq.s32.totalorder %s18, 0
      %p60 = por %p58, %p59
      %p61 = scmp.ne.s32.totalorder %s49, %s50
      %p62 = scmp.eq.s32.totalorder %s19, 1
      %p63 = por %p61, %p62
      %p65 = scmp.ne.s32.totalorder %s50, %s64
      %p66 = scmp.eq.s32.totalorder %s19, 0
      %p67 = por %p65, %p66
      %s69 = sadd.s32 %s68, 1
      %p72 = scmp.eq.s32.totalorder %s13, 1
      %p73 = scmp.ne.s32.totalorder %s68, %s70
      %p74 = scmp.eq.s32.totalorder %s13, 0
      %p75 = por %p73, %p74
      %p76 = scmp.ne.s32.totalorder %s68, %s70
      %p77 = scmp.eq.s32.totalorder %s18, 1
      %p78 = por %p76, %p77
      %p79 = scmp.ne.s32.totalorder %s70, %s71
      %p80 = scmp.eq.s32.totalorder %s18, 0
      %p81 = por %p79, %p80
      %p82 = scmp.ne.s32.totalorder %s70, %s71
      %p83 = scmp.eq.s32.totalorder %s19, 1
      %p84 = por %p82, %p83
      %p86 = scmp.ne.s32.totalorder %s71, %s85
      %p87 = scmp.eq.s32.totalorder %s19, 0
      %p88 = por %p86, %p87
      %s90 = sadd.s32 %s89, 1
      %p93 = scmp.eq.s32.totalorder %s13, 1
      %p94 = scmp.ne.s32.totalorder %s89, %s91
      %p95 = scmp.eq.s32.totalorder %s13, 0
      %p96 = por %p94, %p95
      %p97 = scmp.ne.s32.totalorder %s89, %s91
      %p98 = scmp.eq.s32.totalorder %s18, 1
      %p99 = por %p97, %p98
      %p100 = scmp.ne.s32.totalorder %s91, %s92
      %p101 = scmp.eq.s32.totalorder %s18, 0
      %p102 = por %p100, %p101
      %p103 = scmp.ne.s32.totalorder %s91, %s92
      %p104 = scmp.eq.s32.totalorder %s19, 1
      %p105 = por %p103, %p104
      %p107 = scmp.ne.s32.totalorder %s92, %s106
      %p108 = scmp.eq.s32.totalorder %s19, 0
      %p109 = por %p107, %p108
      %s110 = ssub.s32 %s13, %s20
      %p111 = scmp.eq.s32.totalorder %s110, 0
      %s113 = sadd.s32 %s112, 1
      %s114 = scalar_select %p111, %s112, %s113
      %p117 = pneg %p111
      %p118 = scmp.eq.s32.totalorder %s13, 1
      %p119 = por %p117, %p118
      %p120 = scmp.ne.s32.totalorder %s112, %s115
      %p121 = scmp.eq.s32.totalorder %s13, 0
      %p122 = por %p120, %p121
      %p123 = scmp.ne.s32.totalorder %s112, %s115
      %p124 = scmp.eq.s32.totalorder %s18, 1
      %p125 = por %p123, %p124
      %p126 = scmp.ne.s32.totalorder %s115, %s116
      %p127 = scmp.eq.s32.totalorder %s18, 0
      %p128 = por %p126, %p127
      %p129 = scmp.ne.s32.totalorder %s115, %s116
      %p130 = scmp.eq.s32.totalorder %s19, 1
      %p131 = por %p129, %p130
      %p133 = scmp.ne.s32.totalorder %s116, %s132
      %p134 = scmp.eq.s32.totalorder %s19, 0
      %p135 = por %p133, %p134
      %p136 = scmp.le.s32.totalorder 1, %s13
      %p137 = scmp.lt.s32.totalorder %s13, 3
      %p138 = pnand %p136, %p137
      %p139 = pneg %p138
      // Predicated region
      $region9: #{tpu_custom_call.1} parent=5 // pred_check
        _
      $region10: #{tpu_custom_call.1} parent=5 // pred_check_branch
        %141 = sbr.rel (%p138) target = $region12
      $region11: #{tpu_custom_call.1} parent=5 // pred_region
        %s142 = ssub.s32 %s13, 1
        // Predicated region
        $region13: #{tpu_custom_call.1} parent=11 // pred_check
          %p143 = pneg %p60
        $region14: #{tpu_custom_call.1} parent=11 // pred_check_branch
          %145 = sbr.rel (%p143) target = $region16
        $region15: #{tpu_custom_call.1} parent=11 // pred_region
          _
        $region16: #{tpu_custom_call.1} parent=11 // pred_fallthru
          _
        // Predicated region
        $region17: #{tpu_custom_call.1} parent=11 // pred_check
          %p146 = pneg %p81
        $region18: #{tpu_custom_call.1} parent=11 // pred_check_branch
          %148 = sbr.rel (%p146) target = $region20
        $region19: #{tpu_custom_call.1} parent=11 // pred_region
          _
        $region20: #{tpu_custom_call.1} parent=11 // pred_fallthru
          _
        // Predicated region
        $region21: #{tpu_custom_call.1} parent=11 // pred_check
          %p149 = pneg %p102
        $region22: #{tpu_custom_call.1} parent=11 // pred_check_branch
          %151 = sbr.rel (%p149) target = $region24
        $region23: #{tpu_custom_call.1} parent=11 // pred_region
          _
        $region24: #{tpu_custom_call.1} parent=11 // pred_fallthru
          _
      $region12: #{tpu_custom_call.1} parent=5 // pred_fallthru
        _
      %p152 = scmp.lt.s32.totalorder %s13, 2
      // Predicated region
      $region25: #{tpu_custom_call.1} parent=5 // pred_check
        %p153 = pneg %p152
      $region26: #{tpu_custom_call.1} parent=5 // pred_check_branch
        %155 = sbr.rel (%p153) target = $region28
      $region27: #{tpu_custom_call.1} parent=5 // pred_region
        // Predicated region
        $region29: #{tpu_custom_call.1} parent=27 // pred_check
          %p156 = pneg %p33
        $region30: #{tpu_custom_call.1} parent=27 // pred_check_branch
          %158 = sbr.rel (%p156) target = $region32
        $region31: #{tpu_custom_call.1} parent=27 // pred_region
          %p159 = scmp.lt.s32.totalorder %s13, 1
          %s160 = scalar_select %p159, %s13, 1
          %s161 = smul.addr %s160, 2
          %s162 = smul.addr %s161, 4
          %s163 = scalar_lea.vmem %s0, %s162
        $region32: #{tpu_custom_call.1} parent=27 // pred_fallthru
          _
      $region28: #{tpu_custom_call.1} parent=5 // pred_fallthru
        _
      %p164 = scmp.le.s32.totalorder 1, %s13
      %p165 = scmp.lt.s32.totalorder %s13, 3
      %p166 = pnand %p164, %p165
      %p167 = pneg %p166
      // Predicated region
      $region33: #{tpu_custom_call.1} parent=5 // pred_check
        _
      $region34: #{tpu_custom_call.1} parent=5 // pred_check_branch
        %169 = sbr.rel (%p166) target = $region36
      $region35: #{tpu_custom_call.1} parent=5 // pred_region
        %s170 = ssub.s32 %s13, 1
        %p171 = scmp.lt.s32.totalorder %s18, 1
        %s172 = scalar_select %p171, %s18, 1
        %s173 = smul.addr %s172, 2
        %s174 = smul.addr %s173, 4
        %s175 = scalar_lea.vmem %s0, %s174
        %p176 = pneg %p39
        %p177 = pneg %p36
        %p178 = pneg %p60
        %p179 = pneg %p57
        %p180 = pneg %p81
        %p181 = pneg %p78
        %p182 = pneg %p102
        %p183 = pneg %p99
        %p184 = pneg %p128
        %p185 = pneg %p125
        %s186 = sand.u32 %s115, 1
        %s187 = scalar_lea.sflag [#allocation3], %s186
        %s188 = sand.u32 %s115, 1
        %s189 = smul.addr %s188, 8
        %s190 = scalar_lea.vmem [#allocation2], %s189
        %p191 = scmp.lt.s32.totalorder %s18, 1
        %s192 = scalar_select %p191, %s18, 1
        %s193 = smul.addr %s192, 2
        %s194 = smul.addr %s193, 4
        %s195 = scalar_lea.vmem %s0, %s194
        %v196 = vld [vmem:[%s195] sm:$0xff]
        %v197 = vld [vmem:[%s1] sm:$0xff]
        %v198 = vld [vmem:[%s1 + $0x8] sm:$0xff]
        %v199 = vld [vmem:[%s1 + $0x10] sm:$0xff]
        %v200 = vld [vmem:[%s1 + $0x18] sm:$0xff]
        %v201 = vld [vmem:[%s1 + $0x20] sm:$0xff]
        %v202 = vld [vmem:[%s1 + $0x28] sm:$0xff]
        %v203 = vld [vmem:[%s1 + $0x30] sm:$0xff]
        %v204 = vld [vmem:[%s1 + $0x38] sm:$0xff]
        %v205 = vld [vmem:[%s1 + $0x40] sm:$0xff]
        %v206 = vld [vmem:[%s1 + $0x48] sm:$0xff]
        %v207 = vld [vmem:[%s1 + $0x50] sm:$0xff]
        %v208 = vld [vmem:[%s1 + $0x58] sm:$0xff]
        %v209 = vld [vmem:[%s1 + $0x60] sm:$0xff]
        %v210 = vld [vmem:[%s1 + $0x68] sm:$0xff]
        %v211 = vld [vmem:[%s1 + $0x70] sm:$0xff]
        %v212 = vld [vmem:[%s1 + $0x78] sm:$0xff]
        %v213 = vld [vmem:[%s1 + $0x80] sm:$0xff]
        %v214 = vld [vmem:[%s1 + $0x88] sm:$0xff]
        %v215 = vld [vmem:[%s1 + $0x90] sm:$0xff]
        %v216 = vld [vmem:[%s1 + $0x98] sm:$0xff]
        %v217 = vld [vmem:[%s1 + $0xa0] sm:$0xff]
        %v218 = vld [vmem:[%s1 + $0xa8] sm:$0xff]
        %v219 = vld [vmem:[%s1 + $0xb0] sm:$0xff]
        %v220 = vld [vmem:[%s1 + $0xb8] sm:$0xff]
        %v221 = vld [vmem:[%s1 + $0xc0] sm:$0xff]
        %v222 = vld [vmem:[%s1 + $0xc8] sm:$0xff]
        %v223 = vld [vmem:[%s1 + $0xd0] sm:$0xff]
        %v224 = vld [vmem:[%s1 + $0xd8] sm:$0xff]
        %v225 = vld [vmem:[%s1 + $0xe0] sm:$0xff]
        %v226 = vld [vmem:[%s1 + $0xe8] sm:$0xff]
        %v227 = vld [vmem:[%s1 + $0xf0] sm:$0xff]
        %v228 = vld [vmem:[%s1 + $0xf8] sm:$0xff]
        %v229 = vld [vmem:[%s1 + $0x100] sm:$0xff]
        %v230 = vld [vmem:[%s1 + $0x108] sm:$0xff]
        %v231 = vld [vmem:[%s1 + $0x110] sm:$0xff]
        %v232 = vld [vmem:[%s1 + $0x118] sm:$0xff]
        %v233 = vld [vmem:[%s1 + $0x120] sm:$0xff]
        %v234 = vld [vmem:[%s1 + $0x128] sm:$0xff]
        %v235 = vld [vmem:[%s1 + $0x130] sm:$0xff]
        %v236 = vld [vmem:[%s1 + $0x138] sm:$0xff]
        %v237 = vld [vmem:[%s1 + $0x140] sm:$0xff]
        %v238 = vld [vmem:[%s1 + $0x148] sm:$0xff]
        %v239 = vld [vmem:[%s1 + $0x150] sm:$0xff]
        %v240 = vld [vmem:[%s1 + $0x158] sm:$0xff]
        %v241 = vld [vmem:[%s1 + $0x160] sm:$0xff]
        %v242 = vld [vmem:[%s1 + $0x168] sm:$0xff]
        %v243 = vld [vmem:[%s1 + $0x170] sm:$0xff]
        %v244 = vld [vmem:[%s1 + $0x178] sm:$0xff]
        %v245 = vld [vmem:[%s2] sm:$0xf]
        %v246 = vld [vmem:[%s3] sm:$0xf]
        %v248 = vcombine.high %v196, %v196
        %vm249 = vcmask 31744
        %v251 = vsel %vm249, %v197, 0
        %v254 = vsel %vm249, %v198, 0
        %v257 = vsel %vm249, %v199, 0
        %v260 = vsel %vm249, %v200, 0
        %v263 = vsel %vm249, %v201, 0
        %v266 = vsel %vm249, %v202, 0
        %v269 = vsel %vm249, %v203, 0
        %v272 = vsel %vm249, %v204, 0
        %v275 = vsel %vm249, %v205, 0
        %v278 = vsel %vm249, %v206, 0
        %v281 = vsel %vm249, %v207, 0
        %v284 = vsel %vm249, %v208, 0
        %v287 = vsel %vm249, %v209, 0
        %v290 = vsel %vm249, %v210, 0
        %v293 = vsel %vm249, %v211, 0
        %v296 = vsel %vm249, %v212, 0
        %v299 = vsel %vm249, %v213, 0
        %v302 = vsel %vm249, %v214, 0
        %v305 = vsel %vm249, %v215, 0
        %v308 = vsel %vm249, %v216, 0
        %v311 = vsel %vm249, %v217, 0
        %v314 = vsel %vm249, %v218, 0
        %v317 = vsel %vm249, %v219, 0
        %v320 = vsel %vm249, %v220, 0
        %v323 = vsel %vm249, %v221, 0
        %v326 = vsel %vm249, %v222, 0
        %v329 = vsel %vm249, %v223, 0
        %v332 = vsel %vm249, %v224, 0
        %v335 = vsel %vm249, %v225, 0
        %v338 = vsel %vm249, %v226, 0
        %v341 = vsel %vm249, %v227, 0
        %v344 = vsel %vm249, %v228, 0
        %v347 = vsel %vm249, %v229, 0
        %v350 = vsel %vm249, %v230, 0
        %v353 = vsel %vm249, %v231, 0
        %v356 = vsel %vm249, %v232, 0
        %v359 = vsel %vm249, %v233, 0
        %v362 = vsel %vm249, %v234, 0
        %v365 = vsel %vm249, %v235, 0
        %v368 = vsel %vm249, %v236, 0
        %v371 = vsel %vm249, %v237, 0
        %v374 = vsel %vm249, %v238, 0
        %v377 = vsel %vm249, %v239, 0
        %v380 = vsel %vm249, %v240, 0
        %v383 = vsel %vm249, %v241, 0
        %v386 = vsel %vm249, %v242, 0
        %v389 = vsel %vm249, %v243, 0
        %v392 = vsel %vm249, %v244, 0
        %vm394 = vcmask 1043456
        %v395 = vsel %vm394, %v196, 0
        %v397 = vsel %vm394, %v248, 0
        %399 = vmatprep.subr.mxu0 0.0
        %400 = vmatpush1.msra.mxu0 0.0
        %401 = vmatprep.subr.mxu0 0.0
        %402 = vmatpush1.msra.mxu0 0.0
        %403 = vmatprep.subr.mxu0 0.0
        %404 = vmatpush1.msra.mxu0 0.0
        %405 = vmatprep.subr.mxu0 0.0
        %406 = vmatpush1.msra.mxu0 0.0
        %407 = vmatprep.subr.mxu0 0.0
        %408 = vmatpush1.msra.mxu0 0.0
        %409 = vmatprep.subr.mxu0 0.0
        %410 = vmatpush1.msra.mxu0 0.0
        %411 = vmatprep.subr.mxu0 0.0
        %412 = vmatpush1.msra.mxu0 0.0
        %413 = vmatprep.subr.mxu0 0.0
        %414 = vmatpush1.msra.mxu0 0.0
        %415 = vmatprep.subr.mxu0 0.0
        %416 = vmatpush1.msra.mxu0 0.0
        %417 = vmatprep.subr.mxu0 0.0
        %418 = vmatpush1.msra.mxu0 0.0
        %419 = vmatprep.subr.mxu0 0.0
        %420 = vmatpush1.msra.mxu0 0.0
        %421 = vmatprep.subr.mxu0 0.0
        %422 = vmatpush1.msra.mxu0 0.0
        %423 = vmatprep.subr.mxu0 0.0
        %424 = vmatpush1.msra.mxu0 0.0
        %425 = vmatprep.subr.mxu0 0.0
        %426 = vmatpush1.msra.mxu0 0.0
        %427 = vmatprep.subr.mxu0 0.0
        %428 = vmatpush1.msra.mxu0 0.0
        %429 = vmatprep.subr.mxu0 %v397
        %430 = vmatpush1.msra.mxu0 %v395
        %431 = vmatprep.subr.mxu0 0.0
        %432 = vmatpush2.msra.mxu0 0.0
        %433 = vmatprep.subr.mxu0 0.0
        %434 = vmatpush2.msra.mxu0 0.0
        %435 = vmatprep.subr.mxu0 0.0
        %436 = vmatpush2.msra.mxu0 0.0
        %437 = vmatprep.subr.mxu0 0.0
        %438 = vmatpush2.msra.mxu0 0.0
        %439 = vmatprep.subr.mxu0 0.0
        %440 = vmatpush2.msra.mxu0 0.0
        %441 = vmatprep.subr.mxu0 0.0
        %442 = vmatpush2.msra.mxu0 0.0
        %443 = vmatprep.subr.mxu0 0.0
        %444 = vmatpush2.msra.mxu0 0.0
        %445 = vmatprep.subr.mxu0 0.0
        %446 = vmatpush2.msra.mxu0 0.0
        %447 = vmatprep.subr.mxu0 0.0
        %448 = vmatpush2.msra.mxu0 0.0
        %449 = vmatprep.subr.mxu0 0.0
        %450 = vmatpush2.msra.mxu0 0.0
        %451 = vmatprep.subr.mxu0 0.0
        %452 = vmatpush2.msra.mxu0 0.0
        %453 = vmatprep.subr.mxu0 0.0
        %454 = vmatpush2.msra.mxu0 0.0
        %455 = vmatprep.subr.mxu0 0.0
        %456 = vmatpush2.msra.mxu0 0.0
        %457 = vmatprep.subr.mxu0 0.0
        %458 = vmatpush2.msra.mxu0 0.0
        %459 = vmatprep.subr.mxu0 0.0
        %460 = vmatpush2.msra.mxu0 0.0
        %461 = vmatprep.subr.mxu0 0.0
        %462 = vmatpush2.msra.mxu0 0.0
        %463 = vmatprep.mubr.f32.mxu0 0.0
        %464 = vmatmul.mubr.f32.gmra.mxu0 %v251
        %v465 = vpop.f32.mrf.mxu0
        %v466 = vadd.f32 0.0, %v465
        %v467 = vpop.f32.mrf.mxu0
        %v468 = vadd.f32 0.0, %v467
        %469 = vmatprep.mubr.f32.mxu0 0.0
        %470 = vmatmul.mubr.f32.gmra.mxu0 %v254
        %v471 = vpop.f32.mrf.mxu0
        %v472 = vadd.f32 0.0, %v471
        %v473 = vpop.f32.mrf.mxu0
        %v474 = vadd.f32 0.0, %v473
        %475 = vmatprep.mubr.f32.mxu0 0.0
        %476 = vmatmul.mubr.f32.gmra.mxu0 %v257
        %v477 = vpop.f32.mrf.mxu0
        %v478 = vadd.f32 0.0, %v477
        %v479 = vpop.f32.mrf.mxu0
        %v480 = vadd.f32 0.0, %v479
        %481 = vmatprep.mubr.f32.mxu0 0.0
        %482 = vmatmul.mubr.f32.gmra.mxu0 %v260
        %v483 = vpop.f32.mrf.mxu0
        %v484 = vadd.f32 0.0, %v483
        %v485 = vpop.f32.mrf.mxu0
        %v486 = vadd.f32 0.0, %v485
        %487 = vmatprep.mubr.f32.mxu0 0.0
        %488 = vmatmul.mubr.f32.gmra.mxu0 %v263
        %v489 = vpop.f32.mrf.mxu0
        %v490 = vadd.f32 0.0, %v489
        %v491 = vpop.f32.mrf.mxu0
        %v492 = vadd.f32 0.0, %v491
        %493 = vmatprep.mubr.f32.mxu0 0.0
        %494 = vmatmul.mubr.f32.gmra.mxu0 %v266
        %v495 = vpop.f32.mrf.mxu0
        %v496 = vadd.f32 0.0, %v495
        %v497 = vpop.f32.mrf.mxu0
        %v498 = vadd.f32 0.0, %v497
        %499 = vmatprep.mubr.f32.mxu0 0.0
        %500 = vmatmul.mubr.f32.gmra.mxu0 %v269
        %v501 = vpop.f32.mrf.mxu0
        %v502 = vadd.f32 0.0, %v501
        %v503 = vpop.f32.mrf.mxu0
        %v504 = vadd.f32 0.0, %v503
        %505 = vmatprep.mubr.f32.mxu0 0.0
        %506 = vmatmul.mubr.f32.gmra.mxu0 %v272
        %v507 = vpop.f32.mrf.mxu0
        %v508 = vadd.f32 0.0, %v507
        %v509 = vpop.f32.mrf.mxu0
        %v510 = vadd.f32 0.0, %v509
        %511 = vmatprep.mubr.f32.mxu0 0.0
        %512 = vmatmul.mubr.f32.gmra.mxu0 %v275
        %v513 = vpop.f32.mrf.mxu0
        %v514 = vadd.f32 0.0, %v513
        %v515 = vpop.f32.mrf.mxu0
        %v516 = vadd.f32 0.0, %v515
        %517 = vmatprep.mubr.f32.mxu0 0.0
        %518 = vmatmul.mubr.f32.gmra.mxu0 %v278
        %v519 = vpop.f32.mrf.mxu0
        %v520 = vadd.f32 0.0, %v519
        %v521 = vpop.f32.mrf.mxu0
        %v522 = vadd.f32 0.0, %v521
        %523 = vmatprep.mubr.f32.mxu0 0.0
        %524 = vmatmul.mubr.f32.gmra.mxu0 %v281
        %v525 = vpop.f32.mrf.mxu0
        %v526 = vadd.f32 0.0, %v525
        %v527 = vpop.f32.mrf.mxu0
        %v528 = vadd.f32 0.0, %v527
        %529 = vmatprep.mubr.f32.mxu0 0.0
        %530 = vmatmul.mubr.f32.gmra.mxu0 %v284
        %v531 = vpop.f32.mrf.mxu0
        %v532 = vadd.f32 0.0, %v531
        %v533 = vpop.f32.mrf.mxu0
        %v534 = vadd.f32 0.0, %v533
        %535 = vmatprep.mubr.f32.mxu0 0.0
        %536 = vmatmul.mubr.f32.gmra.mxu0 %v287
        %v537 = vpop.f32.mrf.mxu0
        %v538 = vadd.f32 0.0, %v537
        %v539 = vpop.f32.mrf.mxu0
        %v540 = vadd.f32 0.0, %v539
        %541 = vmatprep.mubr.f32.mxu0 0.0
        %542 = vmatmul.mubr.f32.gmra.mxu0 %v290
        %v543 = vpop.f32.mrf.mxu0
        %v544 = vadd.f32 0.0, %v543
        %v545 = vpop.f32.mrf.mxu0
        %v546 = vadd.f32 0.0, %v545
        %547 = vmatprep.mubr.f32.mxu0 0.0
        %548 = vmatmul.mubr.f32.gmra.mxu0 %v293
        %v549 = vpop.f32.mrf.mxu0
        %v550 = vadd.f32 0.0, %v549
        %v551 = vpop.f32.mrf.mxu0
        %v552 = vadd.f32 0.0, %v551
        %553 = vmatprep.mubr.f32.mxu0 0.0
        %554 = vmatmul.mubr.f32.gmra.mxu0 %v296
        %v555 = vpop.f32.mrf.mxu0
        %v556 = vadd.f32 0.0, %v555
        %v557 = vpop.f32.mrf.mxu0
        %v558 = vadd.f32 0.0, %v557
        %559 = vmatprep.mubr.f32.mxu0 0.0
        %560 = vmatmul.mubr.f32.gmra.mxu0 %v299
        %v561 = vpop.f32.mrf.mxu0
        %v562 = vadd.f32 0.0, %v561
        %v563 = vpop.f32.mrf.mxu0
        %v564 = vadd.f32 0.0, %v563
        %565 = vmatprep.mubr.f32.mxu0 0.0
        %566 = vmatmul.mubr.f32.gmra.mxu0 %v302
        %v567 = vpop.f32.mrf.mxu0
        %v568 = vadd.f32 0.0, %v567
        %v569 = vpop.f32.mrf.mxu0
        %v570 = vadd.f32 0.0, %v569
        %571 = vmatprep.mubr.f32.mxu0 0.0
        %572 = vmatmul.mubr.f32.gmra.mxu0 %v305
        %v573 = vpop.f32.mrf.mxu0
        %v574 = vadd.f32 0.0, %v573
        %v575 = vpop.f32.mrf.mxu0
        %v576 = vadd.f32 0.0, %v575
        %577 = vmatprep.mubr.f32.mxu0 0.0
        %578 = vmatmul.mubr.f32.gmra.mxu0 %v308
        %v579 = vpop.f32.mrf.mxu0
        %v580 = vadd.f32 0.0, %v579
        %v581 = vpop.f32.mrf.mxu0
        %v582 = vadd.f32 0.0, %v581
        %583 = vmatprep.mubr.f32.mxu0 0.0
        %584 = vmatmul.mubr.f32.gmra.mxu0 %v311
        %v585 = vpop.f32.mrf.mxu0
        %v586 = vadd.f32 0.0, %v585
        %v587 = vpop.f32.mrf.mxu0
        %v588 = vadd.f32 0.0, %v587
        %589 = vmatprep.mubr.f32.mxu0 0.0
        %590 = vmatmul.mubr.f32.gmra.mxu0 %v314
        %v591 = vpop.f32.mrf.mxu0
        %v592 = vadd.f32 0.0, %v591
        %v593 = vpop.f32.mrf.mxu0
        %v594 = vadd.f32 0.0, %v593
        %595 = vmatprep.mubr.f32.mxu0 0.0
        %596 = vmatmul.mubr.f32.gmra.mxu0 %v317
        %v597 = vpop.f32.mrf.mxu0
        %v598 = vadd.f32 0.0, %v597
        %v599 = vpop.f32.mrf.mxu0
        %v600 = vadd.f32 0.0, %v599
        %601 = vmatprep.mubr.f32.mxu0 0.0
        %602 = vmatmul.mubr.f32.gmra.mxu0 %v320
        %v603 = vpop.f32.mrf.mxu0
        %v604 = vadd.f32 0.0, %v603
        %v605 = vpop.f32.mrf.mxu0
        %v606 = vadd.f32 0.0, %v605
        %607 = vmatprep.mubr.f32.mxu0 0.0
        %608 = vmatmul.mubr.f32.gmra.mxu0 %v323
        %v609 = vpop.f32.mrf.mxu0
        %v610 = vadd.f32 0.0, %v609
        %v611 = vpop.f32.mrf.mxu0
        %v612 = vadd.f32 0.0, %v611
        %613 = vmatprep.mubr.f32.mxu0 0.0
        %614 = vmatmul.mubr.f32.gmra.mxu0 %v326
        %v615 = vpop.f32.mrf.mxu0
        %v616 = vadd.f32 0.0, %v615
        %v617 = vpop.f32.mrf.mxu0
        %v618 = vadd.f32 0.0, %v617
        %619 = vmatprep.mubr.f32.mxu0 0.0
        %620 = vmatmul.mubr.f32.gmra.mxu0 %v329
        %v621 = vpop.f32.mrf.mxu0
        %v622 = vadd.f32 0.0, %v621
        %v623 = vpop.f32.mrf.mxu0
        %v624 = vadd.f32 0.0, %v623
        %625 = vmatprep.mubr.f32.mxu0 0.0
        %626 = vmatmul.mubr.f32.gmra.mxu0 %v332
        %v627 = vpop.f32.mrf.mxu0
        %v628 = vadd.f32 0.0, %v627
        %v629 = vpop.f32.mrf.mxu0
        %v630 = vadd.f32 0.0, %v629
        %631 = vmatprep.mubr.f32.mxu0 0.0
        %632 = vmatmul.mubr.f32.gmra.mxu0 %v335
        %v633 = vpop.f32.mrf.mxu0
        %v634 = vadd.f32 0.0, %v633
        %v635 = vpop.f32.mrf.mxu0
        %v636 = vadd.f32 0.0, %v635
        %637 = vmatprep.mubr.f32.mxu0 0.0
        %638 = vmatmul.mubr.f32.gmra.mxu0 %v338
        %v639 = vpop.f32.mrf.mxu0
        %v640 = vadd.f32 0.0, %v639
        %v641 = vpop.f32.mrf.mxu0
        %v642 = vadd.f32 0.0, %v641
        %643 = vmatprep.mubr.f32.mxu0 0.0
        %644 = vmatmul.mubr.f32.gmra.mxu0 %v341
        %v645 = vpop.f32.mrf.mxu0
        %v646 = vadd.f32 0.0, %v645
        %v647 = vpop.f32.mrf.mxu0
        %v648 = vadd.f32 0.0, %v647
        %649 = vmatprep.mubr.f32.mxu0 0.0
        %650 = vmatmul.mubr.f32.gmra.mxu0 %v344
        %v651 = vpop.f32.mrf.mxu0
        %v652 = vadd.f32 0.0, %v651
        %v653 = vpop.f32.mrf.mxu0
        %v654 = vadd.f32 0.0, %v653
        %655 = vmatprep.mubr.f32.mxu0 0.0
        %656 = vmatmul.mubr.f32.gmra.mxu0 %v347
        %v657 = vpop.f32.mrf.mxu0
        %v658 = vadd.f32 0.0, %v657
        %v659 = vpop.f32.mrf.mxu0
        %v660 = vadd.f32 0.0, %v659
        %661 = vmatprep.mubr.f32.mxu0 0.0
        %662 = vmatmul.mubr.f32.gmra.mxu0 %v350
        %v663 = vpop.f32.mrf.mxu0
        %v664 = vadd.f32 0.0, %v663
        %v665 = vpop.f32.mrf.mxu0
        %v666 = vadd.f32 0.0, %v665
        %667 = vmatprep.mubr.f32.mxu0 0.0
        %668 = vmatmul.mubr.f32.gmra.mxu0 %v353
        %v669 = vpop.f32.mrf.mxu0
        %v670 = vadd.f32 0.0, %v669
        %v671 = vpop.f32.mrf.mxu0
        %v672 = vadd.f32 0.0, %v671
        %673 = vmatprep.mubr.f32.mxu0 0.0
        %674 = vmatmul.mubr.f32.gmra.mxu0 %v356
        %v675 = vpop.f32.mrf.mxu0
        %v676 = vadd.f32 0.0, %v675
        %v677 = vpop.f32.mrf.mxu0
        %v678 = vadd.f32 0.0, %v677
        %679 = vmatprep.mubr.f32.mxu0 0.0
        %680 = vmatmul.mubr.f32.gmra.mxu0 %v359
        %v681 = vpop.f32.mrf.mxu0
        %v682 = vadd.f32 0.0, %v681
        %v683 = vpop.f32.mrf.mxu0
        %v684 = vadd.f32 0.0, %v683
        %685 = vmatprep.mubr.f32.mxu0 0.0
        %686 = vmatmul.mubr.f32.gmra.mxu0 %v362
        %v687 = vpop.f32.mrf.mxu0
        %v688 = vadd.f32 0.0, %v687
        %v689 = vpop.f32.mrf.mxu0
        %v690 = vadd.f32 0.0, %v689
        %691 = vmatprep.mubr.f32.mxu0 0.0
        %692 = vmatmul.mubr.f32.gmra.mxu0 %v365
        %v693 = vpop.f32.mrf.mxu0
        %v694 = vadd.f32 0.0, %v693
        %v695 = vpop.f32.mrf.mxu0
        %v696 = vadd.f32 0.0, %v695
        %697 = vmatprep.mubr.f32.mxu0 0.0
        %698 = vmatmul.mubr.f32.gmra.mxu0 %v368
        %v699 = vpop.f32.mrf.mxu0
        %v700 = vadd.f32 0.0, %v699
        %v701 = vpop.f32.mrf.mxu0
        %v702 = vadd.f32 0.0, %v701
        %703 = vmatprep.mubr.f32.mxu0 0.0
        %704 = vmatmul.mubr.f32.gmra.mxu0 %v371
        %v705 = vpop.f32.mrf.mxu0
        %v706 = vadd.f32 0.0, %v705
        %v707 = vpop.f32.mrf.mxu0
        %v708 = vadd.f32 0.0, %v707
        %709 = vmatprep.mubr.f32.mxu0 0.0
        %710 = vmatmul.mubr.f32.gmra.mxu0 %v374
        %v711 = vpop.f32.mrf.mxu0
        %v712 = vadd.f32 0.0, %v711
        %v713 = vpop.f32.mrf.mxu0
        %v714 = vadd.f32 0.0, %v713
        %715 = vmatprep.mubr.f32.mxu0 0.0
        %716 = vmatmul.mubr.f32.gmra.mxu0 %v377
        %v717 = vpop.f32.mrf.mxu0
        %v718 = vadd.f32 0.0, %v717
        %v719 = vpop.f32.mrf.mxu0
        %v720 = vadd.f32 0.0, %v719
        %721 = vmatprep.mubr.f32.mxu0 0.0
        %722 = vmatmul.mubr.f32.gmra.mxu0 %v380
        %v723 = vpop.f32.mrf.mxu0
        %v724 = vadd.f32 0.0, %v723
        %v725 = vpop.f32.mrf.mxu0
        %v726 = vadd.f32 0.0, %v725
        %727 = vmatprep.mubr.f32.mxu0 0.0
        %728 = vmatmul.mubr.f32.gmra.mxu0 %v383
        %v729 = vpop.f32.mrf.mxu0
        %v730 = vadd.f32 0.0, %v729
        %v731 = vpop.f32.mrf.mxu0
        %v732 = vadd.f32 0.0, %v731
        %733 = vmatprep.mubr.f32.mxu0 0.0
        %734 = vmatmul.mubr.f32.gmra.mxu0 %v386
        %v735 = vpop.f32.mrf.mxu0
        %v736 = vadd.f32 0.0, %v735
        %v737 = vpop.f32.mrf.mxu0
        %v738 = vadd.f32 0.0, %v737
        %739 = vmatprep.mubr.f32.mxu0 0.0
        %740 = vmatmul.mubr.f32.gmra.mxu0 %v389
        %v741 = vpop.f32.mrf.mxu0
        %v742 = vadd.f32 0.0, %v741
        %v743 = vpop.f32.mrf.mxu0
        %v744 = vadd.f32 0.0, %v743
        %745 = vmatprep.mubr.f32.mxu0 0.0
        %746 = vmatmul.mubr.f32.gmra.mxu0 %v392
        %v747 = vpop.f32.mrf.mxu0
        %v748 = vadd.f32 0.0, %v747
        %v749 = vpop.f32.mrf.mxu0
        %v750 = vadd.f32 0.0, %v749
        %751 = vdwg.mxu0
        %v752 = vmax.f32 %v562, %v564
        %753 = vmax.xlane.f32.xlu0 %v752
        %v754 = vpop.xlane.xlu0 %753
        %v755 = vmax.f32 %v568, %v570
        %756 = vmax.xlane.f32.xlu0 %v755
        %v757 = vpop.xlane.xlu0 %756
        %v758 = vmax.f32 %v574, %v576
        %759 = vmax.xlane.f32.xlu0 %v758
        %v760 = vpop.xlane.xlu0 %759
        %v761 = vmax.f32 %v580, %v582
        %762 = vmax.xlane.f32.xlu0 %v761
        %v763 = vpop.xlane.xlu0 %762
        %v764 = vsub.f32 %v562, %v754
        %v765 = vsub.f32 %v564, %v754
        %v766 = vsub.f32 %v568, %v757
        %v767 = vsub.f32 %v570, %v757
        %v768 = vsub.f32 %v574, %v760
        %v769 = vsub.f32 %v576, %v760
        %v770 = vsub.f32 %v580, %v763
        %v771 = vsub.f32 %v582, %v763
        %v772 = vmul.f32 %v764, 1.442695
        %v773 = vpow.pop %v772
        %v774 = vmul.f32 %v765, 1.442695
        %v775 = vpow.pop %v774
        %v776 = vmul.f32 %v766, 1.442695
        %v777 = vpow.pop %v776
        %v778 = vmul.f32 %v767, 1.442695
        %v779 = vpow.pop %v778
        %v780 = vmul.f32 %v768, 1.442695
        %v781 = vpow.pop %v780
        %v782 = vmul.f32 %v769, 1.442695
        %v783 = vpow.pop %v782
        %v784 = vmul.f32 %v770, 1.442695
        %v785 = vpow.pop %v784
        %v786 = vmul.f32 %v771, 1.442695
        %v787 = vpow.pop %v786
        %v788 = vadd.f32 %v773, %v775
        %789 = vadd.xlane.f32.xlu0 %v788
        %v790 = vpop.xlane.xlu0 %789
        %v791 = vadd.f32 %v777, %v779
        %792 = vadd.xlane.f32.xlu0 %v791
        %v793 = vpop.xlane.xlu0 %792
        %v794 = vadd.f32 %v781, %v783
        %795 = vadd.xlane.f32.xlu0 %v794
        %v796 = vpop.xlane.xlu0 %795
        %v797 = vadd.f32 %v785, %v787
        %798 = vadd.xlane.f32.xlu0 %v797
        %v799 = vpop.xlane.xlu0 %798
        %v800 = vrcp.pop %v790
        %v801 = vrcp.pop %v793
        %v802 = vrcp.pop %v796
        %v803 = vrcp.pop %v799
        %v804 = vmul.f32 %v773, %v800
        %v805 = vmul.f32 %v775, %v800
        %v806 = vmul.f32 %v777, %v801
        %v807 = vmul.f32 %v779, %v801
        %v808 = vmul.f32 %v781, %v802
        %v809 = vmul.f32 %v783, %v802
        %v810 = vmul.f32 %v785, %v803
        %v811 = vmul.f32 %v787, %v803
        %812 = vmatprep.subr.mxu0 0.0
        %813 = vmatpush1.xpose.msra.mxu0 0.0
        %814 = vmatprep.subr.mxu0 0.0
        %815 = vmatpush1.xpose.msra.mxu0 0.0
        %816 = vmatprep.subr.mxu0 0.0
        %817 = vmatpush1.xpose.msra.mxu0 0.0
        %818 = vmatprep.subr.mxu0 0.0
        %819 = vmatpush1.xpose.msra.mxu0 0.0
        %820 = vmatprep.subr.mxu0 0.0
        %821 = vmatpush1.xpose.msra.mxu0 0.0
        %822 = vmatprep.subr.mxu0 0.0
        %823 = vmatpush1.xpose.msra.mxu0 0.0
        %824 = vmatprep.subr.mxu0 0.0
        %825 = vmatpush1.xpose.msra.mxu0 0.0
        %826 = vmatprep.subr.mxu0 0.0
        %827 = vmatpush1.xpose.msra.mxu0 0.0
        %828 = vmatprep.subr.mxu0 0.0
        %829 = vmatpush1.xpose.msra.mxu0 0.0
        %830 = vmatprep.subr.mxu0 0.0
        %831 = vmatpush1.xpose.msra.mxu0 0.0
        %832 = vmatprep.subr.mxu0 0.0
        %833 = vmatpush1.xpose.msra.mxu0 0.0
        %834 = vmatprep.subr.mxu0 0.0
        %835 = vmatpush1.xpose.msra.mxu0 0.0
        %836 = vmatprep.subr.mxu0 %v678
        %837 = vmatpush1.xpose.msra.mxu0 %v676
        %838 = vmatprep.subr.mxu0 %v672
        %839 = vmatpush1.xpose.msra.mxu0 %v670
        %840 = vmatprep.subr.mxu0 %v666
        %841 = vmatpush1.xpose.msra.mxu0 %v664
        %842 = vmatprep.subr.mxu0 %v660
        %843 = vmatpush1.xpose.msra.mxu0 %v658
        %844 = vmatprep.subr.mxu0 0.0
        %845 = vmatpush2.xpose.msra.mxu0 0.0
        %846 = vmatprep.subr.mxu0 0.0
        %847 = vmatpush2.xpose.msra.mxu0 0.0
        %848 = vmatprep.subr.mxu0 0.0
        %849 = vmatpush2.xpose.msra.mxu0 0.0
        %850 = vmatprep.subr.mxu0 0.0
        %851 = vmatpush2.xpose.msra.mxu0 0.0
        %852 = vmatprep.subr.mxu0 0.0
        %853 = vmatpush2.xpose.msra.mxu0 0.0
        %854 = vmatprep.subr.mxu0 0.0
        %855 = vmatpush2.xpose.msra.mxu0 0.0
        %856 = vmatprep.subr.mxu0 0.0
        %857 = vmatpush2.xpose.msra.mxu0 0.0
        %858 = vmatprep.subr.mxu0 0.0
        %859 = vmatpush2.xpose.msra.mxu0 0.0
        %860 = vmatprep.subr.mxu0 0.0
        %861 = vmatpush2.xpose.msra.mxu0 0.0
        %862 = vmatprep.subr.mxu0 0.0
        %863 = vmatpush2.xpose.msra.mxu0 0.0
        %864 = vmatprep.subr.mxu0 0.0
        %865 = vmatpush2.xpose.msra.mxu0 0.0
        %866 = vmatprep.subr.mxu0 0.0
        %867 = vmatpush2.xpose.msra.mxu0 0.0
        %868 = vmatprep.subr.mxu0 0.0
        %869 = vmatpush2.xpose.msra.mxu0 0.0
        %870 = vmatprep.subr.mxu0 0.0
        %871 = vmatpush2.xpose.msra.mxu0 0.0
        %872 = vmatprep.subr.mxu0 0.0
        %873 = vmatpush2.xpose.msra.mxu0 0.0
        %874 = vmatprep.subr.mxu0 0.0
        %875 = vmatpush2.xpose.msra.mxu0 0.0
        %876 = vmatprep.mubr.f32.mxu0 %v805
        %877 = vmatmul.mubr.f32.gmra.mxu0 %v804
        %v878 = vpop.f32.mrf.mxu0
        %v879 = vadd.f32 0.0, %v878
        %v880 = vpop.f32.mrf.mxu0
        %881 = vmatprep.mubr.f32.mxu0 %v807
        %882 = vmatmul.mubr.f32.gmra.mxu0 %v806
        %v883 = vpop.f32.mrf.mxu0
        %v884 = vadd.f32 0.0, %v883
        %v885 = vpop.f32.mrf.mxu0
        %886 = vmatprep.mubr.f32.mxu0 %v809
        %887 = vmatmul.mubr.f32.gmra.mxu0 %v808
        %v888 = vpop.f32.mrf.mxu0
        %v889 = vadd.f32 0.0, %v888
        %v890 = vpop.f32.mrf.mxu0
        %891 = vmatprep.mubr.f32.mxu0 %v811
        %892 = vmatmul.mubr.f32.gmra.mxu0 %v810
        %v893 = vpop.f32.mrf.mxu0
        %v894 = vadd.f32 0.0, %v893
        %v895 = vpop.f32.mrf.mxu0
        %896 = vdwg.mxu0
        %897 = vxpose.xlu0.b32.start [1/16] %v879, 128
        %898 = vxpose.xlu0.b32.cont [2/16] %v884, 128
        %899 = vxpose.xlu0.b32.cont [3/16] %v889, 128
        %900 = vxpose.xlu0.b32.cont [4/16] %v894, 128
        %901 = vxpose.xlu0.b32.cont [5/16] 0.0, 128
        %902 = vxpose.xlu0.b32.cont [6/16] 0.0, 128
        %903 = vxpose.xlu0.b32.cont [7/16] 0.0, 128
        %904 = vxpose.xlu0.b32.cont [8/16] 0.0, 128
        %905 = vxpose.xlu0.b32.cont [9/16] 0.0, 128
        %906 = vxpose.xlu0.b32.cont [10/16] 0.0, 128
        %907 = vxpose.xlu0.b32.cont [11/16] 0.0, 128
        %908 = vxpose.xlu0.b32.cont [12/16] 0.0, 128
        %909 = vxpose.xlu0.b32.cont [13/16] 0.0, 128
        %910 = vxpose.xlu0.b32.cont [14/16] 0.0, 128
        %911 = vxpose.xlu0.b32.cont [15/16] 0.0, 128
        %912 = vxpose.xlu0.b32.end [16/16] 0.0, 128
        %v913 = vpop.trf.xlu0
        %v914 = vpop.trf.xlu0
        %v915 = vpop.trf.xlu0
        %v916 = vpop.trf.xlu0
        %v917 = vpop.trf.xlu0
        %v918 = vpop.trf.xlu0
        %v919 = vpop.trf.xlu0
        %v920 = vpop.trf.xlu0
        %v921 = vpop.trf.xlu0
        %v922 = vpop.trf.xlu0
        %v923 = vpop.trf.xlu0
        %v924 = vpop.trf.xlu0
        %v925 = vpop.trf.xlu0
        %v926 = vpop.trf.xlu0
        %v927 = vpop.trf.xlu0
        %v928 = vpop.trf.xlu0
        %vm929 = vcmask 261120
        %v931 = vsel %vm929, %v913, 0
        %v934 = vsel %vm929, %v914, 0
        %v937 = vsel %vm929, %v915, 0
        %v940 = vsel %vm929, %v916, 0
        %942 = vmatprep.subr.mxu0 0.0
        %943 = vmatpush1.msra.mxu0 0.0
        %944 = vmatprep.subr.mxu0 0.0
        %945 = vmatpush1.msra.mxu0 0.0
        %946 = vmatprep.subr.mxu0 0.0
        %947 = vmatpush1.msra.mxu0 0.0
        %948 = vmatprep.subr.mxu0 0.0
        %949 = vmatpush1.msra.mxu0 0.0
        %950 = vmatprep.subr.mxu0 0.0
        %951 = vmatpush1.msra.mxu0 0.0
        %952 = vmatprep.subr.mxu0 0.0
        %953 = vmatpush1.msra.mxu0 0.0
        %954 = vmatprep.subr.mxu0 0.0
        %955 = vmatpush1.msra.mxu0 0.0
        %956 = vmatprep.subr.mxu0 0.0
        %957 = vmatpush1.msra.mxu0 0.0
        %958 = vmatprep.subr.mxu0 0.0
        %959 = vmatpush1.msra.mxu0 0.0
        %960 = vmatprep.subr.mxu0 0.0
        %961 = vmatpush1.msra.mxu0 0.0
        %962 = vmatprep.subr.mxu0 0.0
        %963 = vmatpush1.msra.mxu0 0.0
        %964 = vmatprep.subr.mxu0 0.0
        %965 = vmatpush1.msra.mxu0 0.0
        %966 = vmatprep.subr.mxu0 %v486
        %967 = vmatpush1.msra.mxu0 %v484
        %968 = vmatprep.subr.mxu0 %v480
        %969 = vmatpush1.msra.mxu0 %v478
        %970 = vmatprep.subr.mxu0 %v474
        %971 = vmatpush1.msra.mxu0 %v472
        %972 = vmatprep.subr.mxu0 %v468
        %973 = vmatpush1.msra.mxu0 %v466
        %974 = vmatprep.subr.mxu0 0.0
        %975 = vmatpush2.msra.mxu0 0.0
        %976 = vmatprep.subr.mxu0 0.0
        %977 = vmatpush2.msra.mxu0 0.0
        %978 = vmatprep.subr.mxu0 0.0
        %979 = vmatpush2.msra.mxu0 0.0
        %980 = vmatprep.subr.mxu0 0.0
        %981 = vmatpush2.msra.mxu0 0.0
        %982 = vmatprep.subr.mxu0 0.0
        %983 = vmatpush2.msra.mxu0 0.0
        %984 = vmatprep.subr.mxu0 0.0
        %985 = vmatpush2.msra.mxu0 0.0
        %986 = vmatprep.subr.mxu0 0.0
        %987 = vmatpush2.msra.mxu0 0.0
        %988 = vmatprep.subr.mxu0 0.0
        %989 = vmatpush2.msra.mxu0 0.0
        %990 = vmatprep.subr.mxu0 0.0
        %991 = vmatpush2.msra.mxu0 0.0
        %992 = vmatprep.subr.mxu0 0.0
        %993 = vmatpush2.msra.mxu0 0.0
        %994 = vmatprep.subr.mxu0 0.0
        %995 = vmatpush2.msra.mxu0 0.0
        %996 = vmatprep.subr.mxu0 0.0
        %997 = vmatpush2.msra.mxu0 0.0
        %998 = vmatprep.subr.mxu0 0.0
        %999 = vmatpush2.msra.mxu0 0.0
        %1000 = vmatprep.subr.mxu0 0.0
        %1001 = vmatpush2.msra.mxu0 0.0
        %1002 = vmatprep.subr.mxu0 0.0
        %1003 = vmatpush2.msra.mxu0 0.0
        %1004 = vmatprep.subr.mxu0 0.0
        %1005 = vmatpush2.msra.mxu0 0.0
        %1006 = vmatprep.mubr.f32.mxu0 0.0
        %1007 = vmatmul.mubr.f32.gmra.mxu0 %v931
        %v1008 = vpop.f32.mrf.mxu0
        %v1009 = vadd.f32 0.0, %v1008
        %v1010 = vpop.f32.mrf.mxu0
        %v1011 = vadd.f32 0.0, %v1010
        %1012 = vmatprep.mubr.f32.mxu0 0.0
        %1013 = vmatmul.mubr.f32.gmra.mxu0 %v934
        %v1014 = vpop.f32.mrf.mxu0
        %v1015 = vadd.f32 0.0, %v1014
        %v1016 = vpop.f32.mrf.mxu0
        %v1017 = vadd.f32 0.0, %v1016
        %1018 = vmatprep.mubr.f32.mxu0 0.0
        %1019 = vmatmul.mubr.f32.gmra.mxu0 %v937
        %v1020 = vpop.f32.mrf.mxu0
        %v1021 = vadd.f32 0.0, %v1020
        %v1022 = vpop.f32.mrf.mxu0
        %v1023 = vadd.f32 0.0, %v1022
        %1024 = vmatprep.mubr.f32.mxu0 0.0
        %1025 = vmatmul.mubr.f32.gmra.mxu0 %v940
        %v1026 = vpop.f32.mrf.mxu0
        %v1027 = vadd.f32 0.0, %v1026
        %v1028 = vpop.f32.mrf.mxu0
        %v1029 = vadd.f32 0.0, %v1028
        %1030 = vdwg.mxu0
        %v1031 = vmax.f32 %v586, %v588
        %1032 = vmax.xlane.f32.xlu0 %v1031
        %v1033 = vpop.xlane.xlu0 %1032
        %v1034 = vmax.f32 %v592, %v594
        %1035 = vmax.xlane.f32.xlu0 %v1034
        %v1036 = vpop.xlane.xlu0 %1035
        %v1037 = vmax.f32 %v598, %v600
        %1038 = vmax.xlane.f32.xlu0 %v1037
        %v1039 = vpop.xlane.xlu0 %1038
        %v1040 = vmax.f32 %v604, %v606
        %1041 = vmax.xlane.f32.xlu0 %v1040
        %v1042 = vpop.xlane.xlu0 %1041
        %v1043 = vsub.f32 %v586, %v1033
        %v1044 = vsub.f32 %v588, %v1033
        %v1045 = vsub.f32 %v592, %v1036
        %v1046 = vsub.f32 %v594, %v1036
        %v1047 = vsub.f32 %v598, %v1039
        %v1048 = vsub.f32 %v600, %v1039
        %v1049 = vsub.f32 %v604, %v1042
        %v1050 = vsub.f32 %v606, %v1042
        %v1051 = vmul.f32 %v1043, 1.442695
        %v1052 = vpow.pop %v1051
        %v1053 = vmul.f32 %v1044, 1.442695
        %v1054 = vpow.pop %v1053
        %v1055 = vmul.f32 %v1045, 1.442695
        %v1056 = vpow.pop %v1055
        %v1057 = vmul.f32 %v1046, 1.442695
        %v1058 = vpow.pop %v1057
        %v1059 = vmul.f32 %v1047, 1.442695
        %v1060 = vpow.pop %v1059
        %v1061 = vmul.f32 %v1048, 1.442695
        %v1062 = vpow.pop %v1061
        %v1063 = vmul.f32 %v1049, 1.442695
        %v1064 = vpow.pop %v1063
        %v1065 = vmul.f32 %v1050, 1.442695
        %v1066 = vpow.pop %v1065
        %v1067 = vadd.f32 %v1052, %v1054
        %1068 = vadd.xlane.f32.xlu0 %v1067
        %v1069 = vpop.xlane.xlu0 %1068
        %v1070 = vadd.f32 %v1056, %v1058
        %1071 = vadd.xlane.f32.xlu0 %v1070
        %v1072 = vpop.xlane.xlu0 %1071
        %v1073 = vadd.f32 %v1060, %v1062
        %1074 = vadd.xlane.f32.xlu0 %v1073
        %v1075 = vpop.xlane.xlu0 %1074
        %v1076 = vadd.f32 %v1064, %v1066
        %1077 = vadd.xlane.f32.xlu0 %v1076
        %v1078 = vpop.xlane.xlu0 %1077
        %v1079 = vrcp.pop %v1069
        %v1080 = vrcp.pop %v1072
        %v1081 = vrcp.pop %v1075
        %v1082 = vrcp.pop %v1078
        %v1083 = vmul.f32 %v1052, %v1079
        %v1084 = vmul.f32 %v1054, %v1079
        %v1085 = vmul.f32 %v1056, %v1080
        %v1086 = vmul.f32 %v1058, %v1080
        %v1087 = vmul.f32 %v1060, %v1081
        %v1088 = vmul.f32 %v1062, %v1081
        %v1089 = vmul.f32 %v1064, %v1082
        %v1090 = vmul.f32 %v1066, %v1082
        %1091 = vmatprep.subr.mxu0 0.0
        %1092 = vmatpush1.xpose.msra.mxu0 0.0
        %1093 = vmatprep.subr.mxu0 0.0
        %1094 = vmatpush1.xpose.msra.mxu0 0.0
        %1095 = vmatprep.subr.mxu0 0.0
        %1096 = vmatpush1.xpose.msra.mxu0 0.0
        %1097 = vmatprep.subr.mxu0 0.0
        %1098 = vmatpush1.xpose.msra.mxu0 0.0
        %1099 = vmatprep.subr.mxu0 0.0
        %1100 = vmatpush1.xpose.msra.mxu0 0.0
        %1101 = vmatprep.subr.mxu0 0.0
        %1102 = vmatpush1.xpose.msra.mxu0 0.0
        %1103 = vmatprep.subr.mxu0 0.0
        %1104 = vmatpush1.xpose.msra.mxu0 0.0
        %1105 = vmatprep.subr.mxu0 0.0
        %1106 = vmatpush1.xpose.msra.mxu0 0.0
        %1107 = vmatprep.subr.mxu0 0.0
        %1108 = vmatpush1.xpose.msra.mxu0 0.0
        %1109 = vmatprep.subr.mxu0 0.0
        %1110 = vmatpush1.xpose.msra.mxu0 0.0
        %1111 = vmatprep.subr.mxu0 0.0
        %1112 = vmatpush1.xpose.msra.mxu0 0.0
        %1113 = vmatprep.subr.mxu0 0.0
        %1114 = vmatpush1.xpose.msra.mxu0 0.0
        %1115 = vmatprep.subr.mxu0 %v702
        %1116 = vmatpush1.xpose.msra.mxu0 %v700
        %1117 = vmatprep.subr.mxu0 %v696
        %1118 = vmatpush1.xpose.msra.mxu0 %v694
        %1119 = vmatprep.subr.mxu0 %v690
        %1120 = vmatpush1.xpose.msra.mxu0 %v688
        %1121 = vmatprep.subr.mxu0 %v684
        %1122 = vmatpush1.xpose.msra.mxu0 %v682
        %1123 = vmatprep.subr.mxu0 0.0
        %1124 = vmatpush2.xpose.msra.mxu0 0.0
        %1125 = vmatprep.subr.mxu0 0.0
        %1126 = vmatpush2.xpose.msra.mxu0 0.0
        %1127 = vmatprep.subr.mxu0 0.0
        %1128 = vmatpush2.xpose.msra.mxu0 0.0
        %1129 = vmatprep.subr.mxu0 0.0
        %1130 = vmatpush2.xpose.msra.mxu0 0.0
        %1131 = vmatprep.subr.mxu0 0.0
        %1132 = vmatpush2.xpose.msra.mxu0 0.0
        %1133 = vmatprep.subr.mxu0 0.0
        %1134 = vmatpush2.xpose.msra.mxu0 0.0
        %1135 = vmatprep.subr.mxu0 0.0
        %1136 = vmatpush2.xpose.msra.mxu0 0.0
        %1137 = vmatprep.subr.mxu0 0.0
        %1138 = vmatpush2.xpose.msra.mxu0 0.0
        %1139 = vmatprep.subr.mxu0 0.0
        %1140 = vmatpush2.xpose.msra.mxu0 0.0
        %1141 = vmatprep.subr.mxu0 0.0
        %1142 = vmatpush2.xpose.msra.mxu0 0.0
        %1143 = vmatprep.subr.mxu0 0.0
        %1144 = vmatpush2.xpose.msra.mxu0 0.0
        %1145 = vmatprep.subr.mxu0 0.0
        %1146 = vmatpush2.xpose.msra.mxu0 0.0
        %1147 = vmatprep.subr.mxu0 0.0
        %1148 = vmatpush2.xpose.msra.mxu0 0.0
        %1149 = vmatprep.subr.mxu0 0.0
        %1150 = vmatpush2.xpose.msra.mxu0 0.0
        %1151 = vmatprep.subr.mxu0 0.0
        %1152 = vmatpush2.xpose.msra.mxu0 0.0
        %1153 = vmatprep.subr.mxu0 0.0
        %1154 = vmatpush2.xpose.msra.mxu0 0.0
        %1155 = vmatprep.mubr.f32.mxu0 %v1084
        %1156 = vmatmul.mubr.f32.gmra.mxu0 %v1083
        %v1157 = vpop.f32.mrf.mxu0
        %v1158 = vadd.f32 0.0, %v1157
        %v1159 = vpop.f32.mrf.mxu0
        %1160 = vmatprep.mubr.f32.mxu0 %v1086
        %1161 = vmatmul.mubr.f32.gmra.mxu0 %v1085
        %v1162 = vpop.f32.mrf.mxu0
        %v1163 = vadd.f32 0.0, %v1162
        %v1164 = vpop.f32.mrf.mxu0
        %1165 = vmatprep.mubr.f32.mxu0 %v1088
        %1166 = vmatmul.mubr.f32.gmra.mxu0 %v1087
        %v1167 = vpop.f32.mrf.mxu0
        %v1168 = vadd.f32 0.0, %v1167
        %v1169 = vpop.f32.mrf.mxu0
        %1170 = vmatprep.mubr.f32.mxu0 %v1090
        %1171 = vmatmul.mubr.f32.gmra.mxu0 %v1089
        %v1172 = vpop.f32.mrf.mxu0
        %v1173 = vadd.f32 0.0, %v1172
        %v1174 = vpop.f32.mrf.mxu0
        %1175 = vdwg.mxu0
        %1176 = vxpose.xlu0.b32.start [1/16] %v1158, 128
        %1177 = vxpose.xlu0.b32.cont [2/16] %v1163, 128
        %1178 = vxpose.xlu0.b32.cont [3/16] %v1168, 128
        %1179 = vxpose.xlu0.b32.cont [4/16] %v1173, 128
        %1180 = vxpose.xlu0.b32.cont [5/16] 0.0, 128
        %1181 = vxpose.xlu0.b32.cont [6/16] 0.0, 128
        %1182 = vxpose.xlu0.b32.cont [7/16] 0.0, 128
        %1183 = vxpose.xlu0.b32.cont [8/16] 0.0, 128
        %1184 = vxpose.xlu0.b32.cont [9/16] 0.0, 128
        %1185 = vxpose.xlu0.b32.cont [10/16] 0.0, 128
        %1186 = vxpose.xlu0.b32.cont [11/16] 0.0, 128
        %1187 = vxpose.xlu0.b32.cont [12/16] 0.0, 128
        %1188 = vxpose.xlu0.b32.cont [13/16] 0.0, 128
        %1189 = vxpose.xlu0.b32.cont [14/16] 0.0, 128
        %1190 = vxpose.xlu0.b32.cont [15/16] 0.0, 128
        %1191 = vxpose.xlu0.b32.end [16/16] 0.0, 128
        %v1192 = vpop.trf.xlu0
        %v1193 = vpop.trf.xlu0
        %v1194 = vpop.trf.xlu0
        %v1195 = vpop.trf.xlu0
        %v1196 = vpop.trf.xlu0
        %v1197 = vpop.trf.xlu0
        %v1198 = vpop.trf.xlu0
        %v1199 = vpop.trf.xlu0
        %v1200 = vpop.trf.xlu0
        %v1201 = vpop.trf.xlu0
        %v1202 = vpop.trf.xlu0
        %v1203 = vpop.trf.xlu0
        %v1204 = vpop.trf.xlu0
        %v1205 = vpop.trf.xlu0
        %v1206 = vpop.trf.xlu0
        %v1207 = vpop.trf.xlu0
        %v1209 = vsel %vm929, %v1192, 0
        %v1212 = vsel %vm929, %v1193, 0
        %v1215 = vsel %vm929, %v1194, 0
        %v1218 = vsel %vm929, %v1195, 0
        %1220 = vmatprep.subr.mxu0 0.0
        %1221 = vmatpush1.msra.mxu0 0.0
        %1222 = vmatprep.subr.mxu0 0.0
        %1223 = vmatpush1.msra.mxu0 0.0
        %1224 = vmatprep.subr.mxu0 0.0
        %1225 = vmatpush1.msra.mxu0 0.0
        %1226 = vmatprep.subr.mxu0 0.0
        %1227 = vmatpush1.msra.mxu0 0.0
        %1228 = vmatprep.subr.mxu0 0.0
        %1229 = vmatpush1.msra.mxu0 0.0
        %1230 = vmatprep.subr.mxu0 0.0
        %1231 = vmatpush1.msra.mxu0 0.0
        %1232 = vmatprep.subr.mxu0 0.0
        %1233 = vmatpush1.msra.mxu0 0.0
        %1234 = vmatprep.subr.mxu0 0.0
        %1235 = vmatpush1.msra.mxu0 0.0
        %1236 = vmatprep.subr.mxu0 0.0
        %1237 = vmatpush1.msra.mxu0 0.0
        %1238 = vmatprep.subr.mxu0 0.0
        %1239 = vmatpush1.msra.mxu0 0.0
        %1240 = vmatprep.subr.mxu0 0.0
        %1241 = vmatpush1.msra.mxu0 0.0
        %1242 = vmatprep.subr.mxu0 0.0
        %1243 = vmatpush1.msra.mxu0 0.0
        %1244 = vmatprep.subr.mxu0 %v510
        %1245 = vmatpush1.msra.mxu0 %v508
        %1246 = vmatprep.subr.mxu0 %v504
        %1247 = vmatpush1.msra.mxu0 %v502
        %1248 = vmatprep.subr.mxu0 %v498
        %1249 = vmatpush1.msra.mxu0 %v496
        %1250 = vmatprep.subr.mxu0 %v492
        %1251 = vmatpush1.msra.mxu0 %v490
        %1252 = vmatprep.subr.mxu0 0.0
        %1253 = vmatpush2.msra.mxu0 0.0
        %1254 = vmatprep.subr.mxu0 0.0
        %1255 = vmatpush2.msra.mxu0 0.0
        %1256 = vmatprep.subr.mxu0 0.0
        %1257 = vmatpush2.msra.mxu0 0.0
        %1258 = vmatprep.subr.mxu0 0.0
        %1259 = vmatpush2.msra.mxu0 0.0
        %1260 = vmatprep.subr.mxu0 0.0
        %1261 = vmatpush2.msra.mxu0 0.0
        %1262 = vmatprep.subr.mxu0 0.0
        %1263 = vmatpush2.msra.mxu0 0.0
        %1264 = vmatprep.subr.mxu0 0.0
        %1265 = vmatpush2.msra.mxu0 0.0
        %1266 = vmatprep.subr.mxu0 0.0
        %1267 = vmatpush2.msra.mxu0 0.0
        %1268 = vmatprep.subr.mxu0 0.0
        %1269 = vmatpush2.msra.mxu0 0.0
        %1270 = vmatprep.subr.mxu0 0.0
        %1271 = vmatpush2.msra.mxu0 0.0
        %1272 = vmatprep.subr.mxu0 0.0
        %1273 = vmatpush2.msra.mxu0 0.0
        %1274 = vmatprep.subr.mxu0 0.0
        %1275 = vmatpush2.msra.mxu0 0.0
        %1276 = vmatprep.subr.mxu0 0.0
        %1277 = vmatpush2.msra.mxu0 0.0
        %1278 = vmatprep.subr.mxu0 0.0
        %1279 = vmatpush2.msra.mxu0 0.0
        %1280 = vmatprep.subr.mxu0 0.0
        %1281 = vmatpush2.msra.mxu0 0.0
        %1282 = vmatprep.subr.mxu0 0.0
        %1283 = vmatpush2.msra.mxu0 0.0
        %1284 = vmatprep.mubr.f32.mxu0 0.0
        %1285 = vmatmul.mubr.f32.gmra.mxu0 %v1209
        %v1286 = vpop.f32.mrf.mxu0
        %v1287 = vadd.f32 0.0, %v1286
        %v1288 = vpop.f32.mrf.mxu0
        %v1289 = vadd.f32 0.0, %v1288
        %1290 = vmatprep.mubr.f32.mxu0 0.0
        %1291 = vmatmul.mubr.f32.gmra.mxu0 %v1212
        %v1292 = vpop.f32.mrf.mxu0
        %v1293 = vadd.f32 0.0, %v1292
        %v1294 = vpop.f32.mrf.mxu0
        %v1295 = vadd.f32 0.0, %v1294
        %1296 = vmatprep.mubr.f32.mxu0 0.0
        %1297 = vmatmul.mubr.f32.gmra.mxu0 %v1215
        %v1298 = vpop.f32.mrf.mxu0
        %v1299 = vadd.f32 0.0, %v1298
        %v1300 = vpop.f32.mrf.mxu0
        %v1301 = vadd.f32 0.0, %v1300
        %1302 = vmatprep.mubr.f32.mxu0 0.0
        %1303 = vmatmul.mubr.f32.gmra.mxu0 %v1218
        %v1304 = vpop.f32.mrf.mxu0
        %v1305 = vadd.f32 0.0, %v1304
        %v1306 = vpop.f32.mrf.mxu0
        %v1307 = vadd.f32 0.0, %v1306
        %1308 = vdwg.mxu0
        %1310 = vrot.lane.b32.xlu0 %v245, 96
        %v1311 = vpop.permute.xlu0 %1310
        %v1312 = vsel %vm929, %v1311, 0
        %1314 = vmatprep.subr.mxu0 0.0
        %1315 = vmatpush1.msra.mxu0 0.0
        %1316 = vmatprep.subr.mxu0 0.0
        %1317 = vmatpush1.msra.mxu0 0.0
        %1318 = vmatprep.subr.mxu0 0.0
        %1319 = vmatpush1.msra.mxu0 0.0
        %1320 = vmatprep.subr.mxu0 0.0
        %1321 = vmatpush1.msra.mxu0 0.0
        %1322 = vmatprep.subr.mxu0 0.0
        %1323 = vmatpush1.msra.mxu0 0.0
        %1324 = vmatprep.subr.mxu0 0.0
        %1325 = vmatpush1.msra.mxu0 0.0
        %1326 = vmatprep.subr.mxu0 0.0
        %1327 = vmatpush1.msra.mxu0 0.0
        %1328 = vmatprep.subr.mxu0 0.0
        %1329 = vmatpush1.msra.mxu0 0.0
        %1330 = vmatprep.subr.mxu0 0.0
        %1331 = vmatpush1.msra.mxu0 0.0
        %1332 = vmatprep.subr.mxu0 0.0
        %1333 = vmatpush1.msra.mxu0 0.0
        %1334 = vmatprep.subr.mxu0 0.0
        %1335 = vmatpush1.msra.mxu0 0.0
        %1336 = vmatprep.subr.mxu0 0.0
        %1337 = vmatpush1.msra.mxu0 0.0
        %1338 = vmatprep.subr.mxu0 %v1307
        %1339 = vmatpush1.msra.mxu0 %v1305
        %1340 = vmatprep.subr.mxu0 %v1301
        %1341 = vmatpush1.msra.mxu0 %v1299
        %1342 = vmatprep.subr.mxu0 %v1295
        %1343 = vmatpush1.msra.mxu0 %v1293
        %1344 = vmatprep.subr.mxu0 %v1289
        %1345 = vmatpush1.msra.mxu0 %v1287
        %1346 = vmatprep.subr.mxu0 0.0
        %1347 = vmatpush2.msra.mxu0 0.0
        %1348 = vmatprep.subr.mxu0 0.0
        %1349 = vmatpush2.msra.mxu0 0.0
        %1350 = vmatprep.subr.mxu0 0.0
        %1351 = vmatpush2.msra.mxu0 0.0
        %1352 = vmatprep.subr.mxu0 0.0
        %1353 = vmatpush2.msra.mxu0 0.0
        %1354 = vmatprep.subr.mxu0 0.0
        %1355 = vmatpush2.msra.mxu0 0.0
        %1356 = vmatprep.subr.mxu0 0.0
        %1357 = vmatpush2.msra.mxu0 0.0
        %1358 = vmatprep.subr.mxu0 0.0
        %1359 = vmatpush2.msra.mxu0 0.0
        %1360 = vmatprep.subr.mxu0 0.0
        %1361 = vmatpush2.msra.mxu0 0.0
        %1362 = vmatprep.subr.mxu0 0.0
        %1363 = vmatpush2.msra.mxu0 0.0
        %1364 = vmatprep.subr.mxu0 0.0
        %1365 = vmatpush2.msra.mxu0 0.0
        %1366 = vmatprep.subr.mxu0 0.0
        %1367 = vmatpush2.msra.mxu0 0.0
        %1368 = vmatprep.subr.mxu0 0.0
        %1369 = vmatpush2.msra.mxu0 0.0
        %1370 = vmatprep.subr.mxu0 0.0
        %1371 = vmatpush2.msra.mxu0 0.0
        %1372 = vmatprep.subr.mxu0 0.0
        %1373 = vmatpush2.msra.mxu0 0.0
        %1374 = vmatprep.subr.mxu0 0.0
        %1375 = vmatpush2.msra.mxu0 0.0
        %1376 = vmatprep.subr.mxu0 0.0
        %1377 = vmatpush2.msra.mxu0 0.0
        %1378 = vmatprep.mubr.f32.mxu0 0.0
        %1379 = vmatmul.mubr.f32.gmra.mxu0 %v1312
        %v1380 = vpop.f32.mrf.mxu0
        %v1381 = vadd.f32 0.0, %v1380
        %v1382 = vpop.f32.mrf.mxu0
        %v1383 = vadd.f32 0.0, %v1382
        %1384 = vdwg.mxu0
        %v1385 = vsel %vm929, %v245, 0
        %1387 = vmatprep.subr.mxu0 0.0
        %1388 = vmatpush1.msra.mxu0 0.0
        %1389 = vmatprep.subr.mxu0 0.0
        %1390 = vmatpush1.msra.mxu0 0.0
        %1391 = vmatprep.subr.mxu0 0.0
        %1392 = vmatpush1.msra.mxu0 0.0
        %1393 = vmatprep.subr.mxu0 0.0
        %1394 = vmatpush1.msra.mxu0 0.0
        %1395 = vmatprep.subr.mxu0 0.0
        %1396 = vmatpush1.msra.mxu0 0.0
        %1397 = vmatprep.subr.mxu0 0.0
        %1398 = vmatpush1.msra.mxu0 0.0
        %1399 = vmatprep.subr.mxu0 0.0
        %1400 = vmatpush1.msra.mxu0 0.0
        %1401 = vmatprep.subr.mxu0 0.0
        %1402 = vmatpush1.msra.mxu0 0.0
        %1403 = vmatprep.subr.mxu0 0.0
        %1404 = vmatpush1.msra.mxu0 0.0
        %1405 = vmatprep.subr.mxu0 0.0
        %1406 = vmatpush1.msra.mxu0 0.0
        %1407 = vmatprep.subr.mxu0 0.0
        %1408 = vmatpush1.msra.mxu0 0.0
        %1409 = vmatprep.subr.mxu0 0.0
        %1410 = vmatpush1.msra.mxu0 0.0
        %1411 = vmatprep.subr.mxu0 %v1029
        %1412 = vmatpush1.msra.mxu0 %v1027
        %1413 = vmatprep.subr.mxu0 %v1023
        %1414 = vmatpush1.msra.mxu0 %v1021
        %1415 = vmatprep.subr.mxu0 %v1017
        %1416 = vmatpush1.msra.mxu0 %v1015
        %1417 = vmatprep.subr.mxu0 %v1011
        %1418 = vmatpush1.msra.mxu0 %v1009
        %1419 = vmatprep.subr.mxu0 0.0
        %1420 = vmatpush2.msra.mxu0 0.0
        %1421 = vmatprep.subr.mxu0 0.0
        %1422 = vmatpush2.msra.mxu0 0.0
        %1423 = vmatprep.subr.mxu0 0.0
        %1424 = vmatpush2.msra.mxu0 0.0
        %1425 = vmatprep.subr.mxu0 0.0
        %1426 = vmatpush2.msra.mxu0 0.0
        %1427 = vmatprep.subr.mxu0 0.0
        %1428 = vmatpush2.msra.mxu0 0.0
        %1429 = vmatprep.subr.mxu0 0.0
        %1430 = vmatpush2.msra.mxu0 0.0
        %1431 = vmatprep.subr.mxu0 0.0
        %1432 = vmatpush2.msra.mxu0 0.0
        %1433 = vmatprep.subr.mxu0 0.0
        %1434 = vmatpush2.msra.mxu0 0.0
        %1435 = vmatprep.subr.mxu0 0.0
        %1436 = vmatpush2.msra.mxu0 0.0
        %1437 = vmatprep.subr.mxu0 0.0
        %1438 = vmatpush2.msra.mxu0 0.0
        %1439 = vmatprep.subr.mxu0 0.0
        %1440 = vmatpush2.msra.mxu0 0.0
        %1441 = vmatprep.subr.mxu0 0.0
        %1442 = vmatpush2.msra.mxu0 0.0
        %1443 = vmatprep.subr.mxu0 0.0
        %1444 = vmatpush2.msra.mxu0 0.0
        %1445 = vmatprep.subr.mxu0 0.0
        %1446 = vmatpush2.msra.mxu0 0.0
        %1447 = vmatprep.subr.mxu0 0.0
        %1448 = vmatpush2.msra.mxu0 0.0
        %1449 = vmatprep.subr.mxu0 0.0
        %1450 = vmatpush2.msra.mxu0 0.0
        %1451 = vmatprep.mubr.f32.mxu0 0.0
        %1452 = vmatmul.mubr.f32.gmra.mxu0 %v1385
        %v1453 = vpop.f32.mrf.mxu0
        %v1454 = vadd.f32 %v1381, %v1453
        %v1455 = vpop.f32.mrf.mxu0
        %v1456 = vadd.f32 %v1383, %v1455
        %1457 = vdwg.mxu0
        %v1458 = vmax.f32 %v610, %v612
        %1459 = vmax.xlane.f32.xlu0 %v1458
        %v1460 = vpop.xlane.xlu0 %1459
        %v1461 = vmax.f32 %v616, %v618
        %1462 = vmax.xlane.f32.xlu0 %v1461
        %v1463 = vpop.xlane.xlu0 %1462
        %v1464 = vmax.f32 %v622, %v624
        %1465 = vmax.xlane.f32.xlu0 %v1464
        %v1466 = vpop.xlane.xlu0 %1465
        %v1467 = vmax.f32 %v628, %v630
        %1468 = vmax.xlane.f32.xlu0 %v1467
        %v1469 = vpop.xlane.xlu0 %1468
        %v1470 = vsub.f32 %v610, %v1460
        %v1471 = vsub.f32 %v612, %v1460
        %v1472 = vsub.f32 %v616, %v1463
        %v1473 = vsub.f32 %v618, %v1463
        %v1474 = vsub.f32 %v622, %v1466
        %v1475 = vsub.f32 %v624, %v1466
        %v1476 = vsub.f32 %v628, %v1469
        %v1477 = vsub.f32 %v630, %v1469
        %v1478 = vmul.f32 %v1470, 1.442695
        %v1479 = vpow.pop %v1478
        %v1480 = vmul.f32 %v1471, 1.442695
        %v1481 = vpow.pop %v1480
        %v1482 = vmul.f32 %v1472, 1.442695
        %v1483 = vpow.pop %v1482
        %v1484 = vmul.f32 %v1473, 1.442695
        %v1485 = vpow.pop %v1484
        %v1486 = vmul.f32 %v1474, 1.442695
        %v1487 = vpow.pop %v1486
        %v1488 = vmul.f32 %v1475, 1.442695
        %v1489 = vpow.pop %v1488
        %v1490 = vmul.f32 %v1476, 1.442695
        %v1491 = vpow.pop %v1490
        %v1492 = vmul.f32 %v1477, 1.442695
        %v1493 = vpow.pop %v1492
        %v1494 = vadd.f32 %v1479, %v1481
        %1495 = vadd.xlane.f32.xlu0 %v1494
        %v1496 = vpop.xlane.xlu0 %1495
        %v1497 = vadd.f32 %v1483, %v1485
        %1498 = vadd.xlane.f32.xlu0 %v1497
        %v1499 = vpop.xlane.xlu0 %1498
        %v1500 = vadd.f32 %v1487, %v1489
        %1501 = vadd.xlane.f32.xlu0 %v1500
        %v1502 = vpop.xlane.xlu0 %1501
        %v1503 = vadd.f32 %v1491, %v1493
        %1504 = vadd.xlane.f32.xlu0 %v1503
        %v1505 = vpop.xlane.xlu0 %1504
        %v1506 = vrcp.pop %v1496
        %v1507 = vrcp.pop %v1499
        %v1508 = vrcp.pop %v1502
        %v1509 = vrcp.pop %v1505
        %v1510 = vmul.f32 %v1479, %v1506
        %v1511 = vmul.f32 %v1481, %v1506
        %v1512 = vmul.f32 %v1483, %v1507
        %v1513 = vmul.f32 %v1485, %v1507
        %v1514 = vmul.f32 %v1487, %v1508
        %v1515 = vmul.f32 %v1489, %v1508
        %v1516 = vmul.f32 %v1491, %v1509
        %v1517 = vmul.f32 %v1493, %v1509
        %1518 = vmatprep.subr.mxu0 0.0
        %1519 = vmatpush1.xpose.msra.mxu0 0.0
        %1520 = vmatprep.subr.mxu0 0.0
        %1521 = vmatpush1.xpose.msra.mxu0 0.0
        %1522 = vmatprep.subr.mxu0 0.0
        %1523 = vmatpush1.xpose.msra.mxu0 0.0
        %1524 = vmatprep.subr.mxu0 0.0
        %1525 = vmatpush1.xpose.msra.mxu0 0.0
        %1526 = vmatprep.subr.mxu0 0.0
        %1527 = vmatpush1.xpose.msra.mxu0 0.0
        %1528 = vmatprep.subr.mxu0 0.0
        %1529 = vmatpush1.xpose.msra.mxu0 0.0
        %1530 = vmatprep.subr.mxu0 0.0
        %1531 = vmatpush1.xpose.msra.mxu0 0.0
        %1532 = vmatprep.subr.mxu0 0.0
        %1533 = vmatpush1.xpose.msra.mxu0 0.0
        %1534 = vmatprep.subr.mxu0 0.0
        %1535 = vmatpush1.xpose.msra.mxu0 0.0
        %1536 = vmatprep.subr.mxu0 0.0
        %1537 = vmatpush1.xpose.msra.mxu0 0.0
        %1538 = vmatprep.subr.mxu0 0.0
        %1539 = vmatpush1.xpose.msra.mxu0 0.0
        %1540 = vmatprep.subr.mxu0 0.0
        %1541 = vmatpush1.xpose.msra.mxu0 0.0
        %1542 = vmatprep.subr.mxu0 %v726
        %1543 = vmatpush1.xpose.msra.mxu0 %v724
        %1544 = vmatprep.subr.mxu0 %v720
        %1545 = vmatpush1.xpose.msra.mxu0 %v718
        %1546 = vmatprep.subr.mxu0 %v714
        %1547 = vmatpush1.xpose.msra.mxu0 %v712
        %1548 = vmatprep.subr.mxu0 %v708
        %1549 = vmatpush1.xpose.msra.mxu0 %v706
        %1550 = vmatprep.subr.mxu0 0.0
        %1551 = vmatpush2.xpose.msra.mxu0 0.0
        %1552 = vmatprep.subr.mxu0 0.0
        %1553 = vmatpush2.xpose.msra.mxu0 0.0
        %1554 = vmatprep.subr.mxu0 0.0
        %1555 = vmatpush2.xpose.msra.mxu0 0.0
        %1556 = vmatprep.subr.mxu0 0.0
        %1557 = vmatpush2.xpose.msra.mxu0 0.0
        %1558 = vmatprep.subr.mxu0 0.0
        %1559 = vmatpush2.xpose.msra.mxu0 0.0
        %1560 = vmatprep.subr.mxu0 0.0
        %1561 = vmatpush2.xpose.msra.mxu0 0.0
        %1562 = vmatprep.subr.mxu0 0.0
        %1563 = vmatpush2.xpose.msra.mxu0 0.0
        %1564 = vmatprep.subr.mxu0 0.0
        %1565 = vmatpush2.xpose.msra.mxu0 0.0
        %1566 = vmatprep.subr.mxu0 0.0
        %1567 = vmatpush2.xpose.msra.mxu0 0.0
        %1568 = vmatprep.subr.mxu0 0.0
        %1569 = vmatpush2.xpose.msra.mxu0 0.0
        %1570 = vmatprep.subr.mxu0 0.0
        %1571 = vmatpush2.xpose.msra.mxu0 0.0
        %1572 = vmatprep.subr.mxu0 0.0
        %1573 = vmatpush2.xpose.msra.mxu0 0.0
        %1574 = vmatprep.subr.mxu0 0.0
        %1575 = vmatpush2.xpose.msra.mxu0 0.0
        %1576 = vmatprep.subr.mxu0 0.0
        %1577 = vmatpush2.xpose.msra.mxu0 0.0
        %1578 = vmatprep.subr.mxu0 0.0
        %1579 = vmatpush2.xpose.msra.mxu0 0.0
        %1580 = vmatprep.subr.mxu0 0.0
        %1581 = vmatpush2.xpose.msra.mxu0 0.0
        %1582 = vmatprep.mubr.f32.mxu0 %v1511
        %1583 = vmatmul.mubr.f32.gmra.mxu0 %v1510
        %v1584 = vpop.f32.mrf.mxu0
        %v1585 = vadd.f32 0.0, %v1584
        %v1586 = vpop.f32.mrf.mxu0
        %1587 = vmatprep.mubr.f32.mxu0 %v1513
        %1588 = vmatmul.mubr.f32.gmra.mxu0 %v1512
        %v1589 = vpop.f32.mrf.mxu0
        %v1590 = vadd.f32 0.0, %v1589
        %v1591 = vpop.f32.mrf.mxu0
        %1592 = vmatprep.mubr.f32.mxu0 %v1515
        %1593 = vmatmul.mubr.f32.gmra.mxu0 %v1514
        %v1594 = vpop.f32.mrf.mxu0
        %v1595 = vadd.f32 0.0, %v1594
        %v1596 = vpop.f32.mrf.mxu0
        %1597 = vmatprep.mubr.f32.mxu0 %v1517
        %1598 = vmatmul.mubr.f32.gmra.mxu0 %v1516
        %v1599 = vpop.f32.mrf.mxu0
        %v1600 = vadd.f32 0.0, %v1599
        %v1601 = vpop.f32.mrf.mxu0
        %1602 = vdwg.mxu0
        %1603 = vxpose.xlu0.b32.start [1/16] %v1585, 128
        %1604 = vxpose.xlu0.b32.cont [2/16] %v1590, 128
        %1605 = vxpose.xlu0.b32.cont [3/16] %v1595, 128
        %1606 = vxpose.xlu0.b32.cont [4/16] %v1600, 128
        %1607 = vxpose.xlu0.b32.cont [5/16] 0.0, 128
        %1608 = vxpose.xlu0.b32.cont [6/16] 0.0, 128
        %1609 = vxpose.xlu0.b32.cont [7/16] 0.0, 128
        %1610 = vxpose.xlu0.b32.cont [8/16] 0.0, 128
        %1611 = vxpose.xlu0.b32.cont [9/16] 0.0, 128
        %1612 = vxpose.xlu0.b32.cont [10/16] 0.0, 128
        %1613 = vxpose.xlu0.b32.cont [11/16] 0.0, 128
        %1614 = vxpose.xlu0.b32.cont [12/16] 0.0, 128
        %1615 = vxpose.xlu0.b32.cont [13/16] 0.0, 128
        %1616 = vxpose.xlu0.b32.cont [14/16] 0.0, 128
        %1617 = vxpose.xlu0.b32.cont [15/16] 0.0, 128
        %1618 = vxpose.xlu0.b32.end [16/16] 0.0, 128
        %v1619 = vpop.trf.xlu0
        %v1620 = vpop.trf.xlu0
        %v1621 = vpop.trf.xlu0
        %v1622 = vpop.trf.xlu0
        %v1623 = vpop.trf.xlu0
        %v1624 = vpop.trf.xlu0
        %v1625 = vpop.trf.xlu0
        %v1626 = vpop.trf.xlu0
        %v1627 = vpop.trf.xlu0
        %v1628 = vpop.trf.xlu0
        %v1629 = vpop.trf.xlu0
        %v1630 = vpop.trf.xlu0
        %v1631 = vpop.trf.xlu0
        %v1632 = vpop.trf.xlu0
        %v1633 = vpop.trf.xlu0
        %v1634 = vpop.trf.xlu0
        %v1636 = vsel %vm929, %v1619, 0
        %v1639 = vsel %vm929, %v1620, 0
        %v1642 = vsel %vm929, %v1621, 0
        %v1645 = vsel %vm929, %v1622, 0
        %1647 = vmatprep.subr.mxu0 0.0
        %1648 = vmatpush1.msra.mxu0 0.0
        %1649 = vmatprep.subr.mxu0 0.0
        %1650 = vmatpush1.msra.mxu0 0.0
        %1651 = vmatprep.subr.mxu0 0.0
        %1652 = vmatpush1.msra.mxu0 0.0
        %1653 = vmatprep.subr.mxu0 0.0
        %1654 = vmatpush1.msra.mxu0 0.0
        %1655 = vmatprep.subr.mxu0 0.0
        %1656 = vmatpush1.msra.mxu0 0.0
        %1657 = vmatprep.subr.mxu0 0.0
        %1658 = vmatpush1.msra.mxu0 0.0
        %1659 = vmatprep.subr.mxu0 0.0
        %1660 = vmatpush1.msra.mxu0 0.0
        %1661 = vmatprep.subr.mxu0 0.0
        %1662 = vmatpush1.msra.mxu0 0.0
        %1663 = vmatprep.subr.mxu0 0.0
        %1664 = vmatpush1.msra.mxu0 0.0
        %1665 = vmatprep.subr.mxu0 0.0
        %1666 = vmatpush1.msra.mxu0 0.0
        %1667 = vmatprep.subr.mxu0 0.0
        %1668 = vmatpush1.msra.mxu0 0.0
        %1669 = vmatprep.subr.mxu0 0.0
        %1670 = vmatpush1.msra.mxu0 0.0
        %1671 = vmatprep.subr.mxu0 %v534
        %1672 = vmatpush1.msra.mxu0 %v532
        %1673 = vmatprep.subr.mxu0 %v528
        %1674 = vmatpush1.msra.mxu0 %v526
        %1675 = vmatprep.subr.mxu0 %v522
        %1676 = vmatpush1.msra.mxu0 %v520
        %1677 = vmatprep.subr.mxu0 %v516
        %1678 = vmatpush1.msra.mxu0 %v514
        %1679 = vmatprep.subr.mxu0 0.0
        %1680 = vmatpush2.msra.mxu0 0.0
        %1681 = vmatprep.subr.mxu0 0.0
        %1682 = vmatpush2.msra.mxu0 0.0
        %1683 = vmatprep.subr.mxu0 0.0
        %1684 = vmatpush2.msra.mxu0 0.0
        %1685 = vmatprep.subr.mxu0 0.0
        %1686 = vmatpush2.msra.mxu0 0.0
        %1687 = vmatprep.subr.mxu0 0.0
        %1688 = vmatpush2.msra.mxu0 0.0
        %1689 = vmatprep.subr.mxu0 0.0
        %1690 = vmatpush2.msra.mxu0 0.0
        %1691 = vmatprep.subr.mxu0 0.0
        %1692 = vmatpush2.msra.mxu0 0.0
        %1693 = vmatprep.subr.mxu0 0.0
        %1694 = vmatpush2.msra.mxu0 0.0
        %1695 = vmatprep.subr.mxu0 0.0
        %1696 = vmatpush2.msra.mxu0 0.0
        %1697 = vmatprep.subr.mxu0 0.0
        %1698 = vmatpush2.msra.mxu0 0.0
        %1699 = vmatprep.subr.mxu0 0.0
        %1700 = vmatpush2.msra.mxu0 0.0
        %1701 = vmatprep.subr.mxu0 0.0
        %1702 = vmatpush2.msra.mxu0 0.0
        %1703 = vmatprep.subr.mxu0 0.0
        %1704 = vmatpush2.msra.mxu0 0.0
        %1705 = vmatprep.subr.mxu0 0.0
        %1706 = vmatpush2.msra.mxu0 0.0
        %1707 = vmatprep.subr.mxu0 0.0
        %1708 = vmatpush2.msra.mxu0 0.0
        %1709 = vmatprep.subr.mxu0 0.0
        %1710 = vmatpush2.msra.mxu0 0.0
        %1711 = vmatprep.mubr.f32.mxu0 0.0
        %1712 = vmatmul.mubr.f32.gmra.mxu0 %v1636
        %v1713 = vpop.f32.mrf.mxu0
        %v1714 = vadd.f32 0.0, %v1713
        %v1715 = vpop.f32.mrf.mxu0
        %v1716 = vadd.f32 0.0, %v1715
        %1717 = vmatprep.mubr.f32.mxu0 0.0
        %1718 = vmatmul.mubr.f32.gmra.mxu0 %v1639
        %v1719 = vpop.f32.mrf.mxu0
        %v1720 = vadd.f32 0.0, %v1719
        %v1721 = vpop.f32.mrf.mxu0
        %v1722 = vadd.f32 0.0, %v1721
        %1723 = vmatprep.mubr.f32.mxu0 0.0
        %1724 = vmatmul.mubr.f32.gmra.mxu0 %v1642
        %v1725 = vpop.f32.mrf.mxu0
        %v1726 = vadd.f32 0.0, %v1725
        %v1727 = vpop.f32.mrf.mxu0
        %v1728 = vadd.f32 0.0, %v1727
        %1729 = vmatprep.mubr.f32.mxu0 0.0
        %1730 = vmatmul.mubr.f32.gmra.mxu0 %v1645
        %v1731 = vpop.f32.mrf.mxu0
        %v1732 = vadd.f32 0.0, %v1731
        %v1733 = vpop.f32.mrf.mxu0
        %v1734 = vadd.f32 0.0, %v1733
        %1735 = vdwg.mxu0
        %1736 = vrot.lane.b32.xlu0 %v245, 64
        %v1737 = vpop.permute.xlu0 %1736
        %v1738 = vsel %vm929, %v1737, 0
        %1740 = vmatprep.subr.mxu0 0.0
        %1741 = vmatpush1.msra.mxu0 0.0
        %1742 = vmatprep.subr.mxu0 0.0
        %1743 = vmatpush1.msra.mxu0 0.0
        %1744 = vmatprep.subr.mxu0 0.0
        %1745 = vmatpush1.msra.mxu0 0.0
        %1746 = vmatprep.subr.mxu0 0.0
        %1747 = vmatpush1.msra.mxu0 0.0
        %1748 = vmatprep.subr.mxu0 0.0
        %1749 = vmatpush1.msra.mxu0 0.0
        %1750 = vmatprep.subr.mxu0 0.0
        %1751 = vmatpush1.msra.mxu0 0.0
        %1752 = vmatprep.subr.mxu0 0.0
        %1753 = vmatpush1.msra.mxu0 0.0
        %1754 = vmatprep.subr.mxu0 0.0
        %1755 = vmatpush1.msra.mxu0 0.0
        %1756 = vmatprep.subr.mxu0 0.0
        %1757 = vmatpush1.msra.mxu0 0.0
        %1758 = vmatprep.subr.mxu0 0.0
        %1759 = vmatpush1.msra.mxu0 0.0
        %1760 = vmatprep.subr.mxu0 0.0
        %1761 = vmatpush1.msra.mxu0 0.0
        %1762 = vmatprep.subr.mxu0 0.0
        %1763 = vmatpush1.msra.mxu0 0.0
        %1764 = vmatprep.subr.mxu0 %v1734
        %1765 = vmatpush1.msra.mxu0 %v1732
        %1766 = vmatprep.subr.mxu0 %v1728
        %1767 = vmatpush1.msra.mxu0 %v1726
        %1768 = vmatprep.subr.mxu0 %v1722
        %1769 = vmatpush1.msra.mxu0 %v1720
        %1770 = vmatprep.subr.mxu0 %v1716
        %1771 = vmatpush1.msra.mxu0 %v1714
        %1772 = vmatprep.subr.mxu0 0.0
        %1773 = vmatpush2.msra.mxu0 0.0
        %1774 = vmatprep.subr.mxu0 0.0
        %1775 = vmatpush2.msra.mxu0 0.0
        %1776 = vmatprep.subr.mxu0 0.0
        %1777 = vmatpush2.msra.mxu0 0.0
        %1778 = vmatprep.subr.mxu0 0.0
        %1779 = vmatpush2.msra.mxu0 0.0
        %1780 = vmatprep.subr.mxu0 0.0
        %1781 = vmatpush2.msra.mxu0 0.0
        %1782 = vmatprep.subr.mxu0 0.0
        %1783 = vmatpush2.msra.mxu0 0.0
        %1784 = vmatprep.subr.mxu0 0.0
        %1785 = vmatpush2.msra.mxu0 0.0
        %1786 = vmatprep.subr.mxu0 0.0
        %1787 = vmatpush2.msra.mxu0 0.0
        %1788 = vmatprep.subr.mxu0 0.0
        %1789 = vmatpush2.msra.mxu0 0.0
        %1790 = vmatprep.subr.mxu0 0.0
        %1791 = vmatpush2.msra.mxu0 0.0
        %1792 = vmatprep.subr.mxu0 0.0
        %1793 = vmatpush2.msra.mxu0 0.0
        %1794 = vmatprep.subr.mxu0 0.0
        %1795 = vmatpush2.msra.mxu0 0.0
        %1796 = vmatprep.subr.mxu0 0.0
        %1797 = vmatpush2.msra.mxu0 0.0
        %1798 = vmatprep.subr.mxu0 0.0
        %1799 = vmatpush2.msra.mxu0 0.0
        %1800 = vmatprep.subr.mxu0 0.0
        %1801 = vmatpush2.msra.mxu0 0.0
        %1802 = vmatprep.subr.mxu0 0.0
        %1803 = vmatpush2.msra.mxu0 0.0
        %1804 = vmatprep.mubr.f32.mxu0 0.0
        %1805 = vmatmul.mubr.f32.gmra.mxu0 %v1738
        %v1806 = vpop.f32.mrf.mxu0
        %v1807 = vadd.f32 0.0, %v1806
        %v1808 = vpop.f32.mrf.mxu0
        %v1809 = vadd.f32 0.0, %v1808
        %1810 = vdwg.mxu0
        %v1811 = vadd.f32 %v1454, %v1807
        %v1812 = vadd.f32 %v1456, %v1809
        %v1813 = vmax.f32 %v634, %v636
        %1814 = vmax.xlane.f32.xlu0 %v1813
        %v1815 = vpop.xlane.xlu0 %1814
        %v1816 = vmax.f32 %v640, %v642
        %1817 = vmax.xlane.f32.xlu0 %v1816
        %v1818 = vpop.xlane.xlu0 %1817
        %v1819 = vmax.f32 %v646, %v648
        %1820 = vmax.xlane.f32.xlu0 %v1819
        %v1821 = vpop.xlane.xlu0 %1820
        %v1822 = vmax.f32 %v652, %v654
        %1823 = vmax.xlane.f32.xlu0 %v1822
        %v1824 = vpop.xlane.xlu0 %1823
        %v1825 = vsub.f32 %v634, %v1815
        %v1826 = vsub.f32 %v636, %v1815
        %v1827 = vsub.f32 %v640, %v1818
        %v1828 = vsub.f32 %v642, %v1818
        %v1829 = vsub.f32 %v646, %v1821
        %v1830 = vsub.f32 %v648, %v1821
        %v1831 = vsub.f32 %v652, %v1824
        %v1832 = vsub.f32 %v654, %v1824
        %v1833 = vmul.f32 %v1825, 1.442695
        %v1834 = vpow.pop %v1833
        %v1835 = vmul.f32 %v1826, 1.442695
        %v1836 = vpow.pop %v1835
        %v1837 = vmul.f32 %v1827, 1.442695
        %v1838 = vpow.pop %v1837
        %v1839 = vmul.f32 %v1828, 1.442695
        %v1840 = vpow.pop %v1839
        %v1841 = vmul.f32 %v1829, 1.442695
        %v1842 = vpow.pop %v1841
        %v1843 = vmul.f32 %v1830, 1.442695
        %v1844 = vpow.pop %v1843
        %v1845 = vmul.f32 %v1831, 1.442695
        %v1846 = vpow.pop %v1845
        %v1847 = vmul.f32 %v1832, 1.442695
        %v1848 = vpow.pop %v1847
        %v1849 = vadd.f32 %v1834, %v1836
        %1850 = vadd.xlane.f32.xlu0 %v1849
        %v1851 = vpop.xlane.xlu0 %1850
        %v1852 = vadd.f32 %v1838, %v1840
        %1853 = vadd.xlane.f32.xlu0 %v1852
        %v1854 = vpop.xlane.xlu0 %1853
        %v1855 = vadd.f32 %v1842, %v1844
        %1856 = vadd.xlane.f32.xlu0 %v1855
        %v1857 = vpop.xlane.xlu0 %1856
        %v1858 = vadd.f32 %v1846, %v1848
        %1859 = vadd.xlane.f32.xlu0 %v1858
        %v1860 = vpop.xlane.xlu0 %1859
        %v1861 = vrcp.pop %v1851
        %v1862 = vrcp.pop %v1854
        %v1863 = vrcp.pop %v1857
        %v1864 = vrcp.pop %v1860
        %v1865 = vmul.f32 %v1834, %v1861
        %v1866 = vmul.f32 %v1836, %v1861
        %v1867 = vmul.f32 %v1838, %v1862
        %v1868 = vmul.f32 %v1840, %v1862
        %v1869 = vmul.f32 %v1842, %v1863
        %v1870 = vmul.f32 %v1844, %v1863
        %v1871 = vmul.f32 %v1846, %v1864
        %v1872 = vmul.f32 %v1848, %v1864
        %1873 = vmatprep.subr.mxu0 0.0
        %1874 = vmatpush1.xpose.msra.mxu0 0.0
        %1875 = vmatprep.subr.mxu0 0.0
        %1876 = vmatpush1.xpose.msra.mxu0 0.0
        %1877 = vmatprep.subr.mxu0 0.0
        %1878 = vmatpush1.xpose.msra.mxu0 0.0
        %1879 = vmatprep.subr.mxu0 0.0
        %1880 = vmatpush1.xpose.msra.mxu0 0.0
        %1881 = vmatprep.subr.mxu0 0.0
        %1882 = vmatpush1.xpose.msra.mxu0 0.0
        %1883 = vmatprep.subr.mxu0 0.0
        %1884 = vmatpush1.xpose.msra.mxu0 0.0
        %1885 = vmatprep.subr.mxu0 0.0
        %1886 = vmatpush1.xpose.msra.mxu0 0.0
        %1887 = vmatprep.subr.mxu0 0.0
        %1888 = vmatpush1.xpose.msra.mxu0 0.0
        %1889 = vmatprep.subr.mxu0 0.0
        %1890 = vmatpush1.xpose.msra.mxu0 0.0
        %1891 = vmatprep.subr.mxu0 0.0
        %1892 = vmatpush1.xpose.msra.mxu0 0.0
        %1893 = vmatprep.subr.mxu0 0.0
        %1894 = vmatpush1.xpose.msra.mxu0 0.0
        %1895 = vmatprep.subr.mxu0 0.0
        %1896 = vmatpush1.xpose.msra.mxu0 0.0
        %1897 = vmatprep.subr.mxu0 %v750
        %1898 = vmatpush1.xpose.msra.mxu0 %v748
        %1899 = vmatprep.subr.mxu0 %v744
        %1900 = vmatpush1.xpose.msra.mxu0 %v742
        %1901 = vmatprep.subr.mxu0 %v738
        %1902 = vmatpush1.xpose.msra.mxu0 %v736
        %1903 = vmatprep.subr.mxu0 %v732
        %1904 = vmatpush1.xpose.msra.mxu0 %v730
        %1905 = vmatprep.subr.mxu0 0.0
        %1906 = vmatpush2.xpose.msra.mxu0 0.0
        %1907 = vmatprep.subr.mxu0 0.0
        %1908 = vmatpush2.xpose.msra.mxu0 0.0
        %1909 = vmatprep.subr.mxu0 0.0
        %1910 = vmatpush2.xpose.msra.mxu0 0.0
        %1911 = vmatprep.subr.mxu0 0.0
        %1912 = vmatpush2.xpose.msra.mxu0 0.0
        %1913 = vmatprep.subr.mxu0 0.0
        %1914 = vmatpush2.xpose.msra.mxu0 0.0
        %1915 = vmatprep.subr.mxu0 0.0
        %1916 = vmatpush2.xpose.msra.mxu0 0.0
        %1917 = vmatprep.subr.mxu0 0.0
        %1918 = vmatpush2.xpose.msra.mxu0 0.0
        %1919 = vmatprep.subr.mxu0 0.0
        %1920 = vmatpush2.xpose.msra.mxu0 0.0
        %1921 = vmatprep.subr.mxu0 0.0
        %1922 = vmatpush2.xpose.msra.mxu0 0.0
        %1923 = vmatprep.subr.mxu0 0.0
        %1924 = vmatpush2.xpose.msra.mxu0 0.0
        %1925 = vmatprep.subr.mxu0 0.0
        %1926 = vmatpush2.xpose.msra.mxu0 0.0
        %1927 = vmatprep.subr.mxu0 0.0
        %1928 = vmatpush2.xpose.msra.mxu0 0.0
        %1929 = vmatprep.subr.mxu0 0.0
        %1930 = vmatpush2.xpose.msra.mxu0 0.0
        %1931 = vmatprep.subr.mxu0 0.0
        %1932 = vmatpush2.xpose.msra.mxu0 0.0
        %1933 = vmatprep.subr.mxu0 0.0
        %1934 = vmatpush2.xpose.msra.mxu0 0.0
        %1935 = vmatprep.subr.mxu0 0.0
        %1936 = vmatpush2.xpose.msra.mxu0 0.0
        %1937 = vmatprep.mubr.f32.mxu0 %v1866
        %1938 = vmatmul.mubr.f32.gmra.mxu0 %v1865
        %v1939 = vpop.f32.mrf.mxu0
        %v1940 = vadd.f32 0.0, %v1939
        %v1941 = vpop.f32.mrf.mxu0
        %1942 = vmatprep.mubr.f32.mxu0 %v1868
        %1943 = vmatmul.mubr.f32.gmra.mxu0 %v1867
        %v1944 = vpop.f32.mrf.mxu0
        %v1945 = vadd.f32 0.0, %v1944
        %v1946 = vpop.f32.mrf.mxu0
        %1947 = vmatprep.mubr.f32.mxu0 %v1870
        %1948 = vmatmul.mubr.f32.gmra.mxu0 %v1869
        %v1949 = vpop.f32.mrf.mxu0
        %v1950 = vadd.f32 0.0, %v1949
        %v1951 = vpop.f32.mrf.mxu0
        %1952 = vmatprep.mubr.f32.mxu0 %v1872
        %1953 = vmatmul.mubr.f32.gmra.mxu0 %v1871
        %v1954 = vpop.f32.mrf.mxu0
        %v1955 = vadd.f32 0.0, %v1954
        %v1956 = vpop.f32.mrf.mxu0
        %1957 = vdwg.mxu0
        %1958 = vxpose.xlu0.b32.start [1/16] %v1940, 128
        %1959 = vxpose.xlu0.b32.cont [2/16] %v1945, 128
        %1960 = vxpose.xlu0.b32.cont [3/16] %v1950, 128
        %1961 = vxpose.xlu0.b32.cont [4/16] %v1955, 128
        %1962 = vxpose.xlu0.b32.cont [5/16] 0.0, 128
        %1963 = vxpose.xlu0.b32.cont [6/16] 0.0, 128
        %1964 = vxpose.xlu0.b32.cont [7/16] 0.0, 128
        %1965 = vxpose.xlu0.b32.cont [8/16] 0.0, 128
        %1966 = vxpose.xlu0.b32.cont [9/16] 0.0, 128
        %1967 = vxpose.xlu0.b32.cont [10/16] 0.0, 128
        %1968 = vxpose.xlu0.b32.cont [11/16] 0.0, 128
        %1969 = vxpose.xlu0.b32.cont [12/16] 0.0, 128
        %1970 = vxpose.xlu0.b32.cont [13/16] 0.0, 128
        %1971 = vxpose.xlu0.b32.cont [14/16] 0.0, 128
        %1972 = vxpose.xlu0.b32.cont [15/16] 0.0, 128
        %1973 = vxpose.xlu0.b32.end [16/16] 0.0, 128
        %v1974 = vpop.trf.xlu0
        %v1975 = vpop.trf.xlu0
        %v1976 = vpop.trf.xlu0
        %v1977 = vpop.trf.xlu0
        %v1978 = vpop.trf.xlu0
        %v1979 = vpop.trf.xlu0
        %v1980 = vpop.trf.xlu0
        %v1981 = vpop.trf.xlu0
        %v1982 = vpop.trf.xlu0
        %v1983 = vpop.trf.xlu0
        %v1984 = vpop.trf.xlu0
        %v1985 = vpop.trf.xlu0
        %v1986 = vpop.trf.xlu0
        %v1987 = vpop.trf.xlu0
        %v1988 = vpop.trf.xlu0
        %v1989 = vpop.trf.xlu0
        %v1991 = vsel %vm929, %v1974, 0
        %v1994 = vsel %vm929, %v1975, 0
        %v1997 = vsel %vm929, %v1976, 0
        %v2000 = vsel %vm929, %v1977, 0
        %2002 = vmatprep.subr.mxu0 0.0
        %2003 = vmatpush1.msra.mxu0 0.0
        %2004 = vmatprep.subr.mxu0 0.0
        %2005 = vmatpush1.msra.mxu0 0.0
        %2006 = vmatprep.subr.mxu0 0.0
        %2007 = vmatpush1.msra.mxu0 0.0
        %2008 = vmatprep.subr.mxu0 0.0
        %2009 = vmatpush1.msra.mxu0 0.0
        %2010 = vmatprep.subr.mxu0 0.0
        %2011 = vmatpush1.msra.mxu0 0.0
        %2012 = vmatprep.subr.mxu0 0.0
        %2013 = vmatpush1.msra.mxu0 0.0
        %2014 = vmatprep.subr.mxu0 0.0
        %2015 = vmatpush1.msra.mxu0 0.0
        %2016 = vmatprep.subr.mxu0 0.0
        %2017 = vmatpush1.msra.mxu0 0.0
        %2018 = vmatprep.subr.mxu0 0.0
        %2019 = vmatpush1.msra.mxu0 0.0
        %2020 = vmatprep.subr.mxu0 0.0
        %2021 = vmatpush1.msra.mxu0 0.0
        %2022 = vmatprep.subr.mxu0 0.0
        %2023 = vmatpush1.msra.mxu0 0.0
        %2024 = vmatprep.subr.mxu0 0.0
        %2025 = vmatpush1.msra.mxu0 0.0
        %2026 = vmatprep.subr.mxu0 %v558
        %2027 = vmatpush1.msra.mxu0 %v556
        %2028 = vmatprep.subr.mxu0 %v552
        %2029 = vmatpush1.msra.mxu0 %v550
        %2030 = vmatprep.subr.mxu0 %v546
        %2031 = vmatpush1.msra.mxu0 %v544
        %2032 = vmatprep.subr.mxu0 %v540
        %2033 = vmatpush1.msra.mxu0 %v538
        %2034 = vmatprep.subr.mxu0 0.0
        %2035 = vmatpush2.msra.mxu0 0.0
        %2036 = vmatprep.subr.mxu0 0.0
        %2037 = vmatpush2.msra.mxu0 0.0
        %2038 = vmatprep.subr.mxu0 0.0
        %2039 = vmatpush2.msra.mxu0 0.0
        %2040 = vmatprep.subr.mxu0 0.0
        %2041 = vmatpush2.msra.mxu0 0.0
        %2042 = vmatprep.subr.mxu0 0.0
        %2043 = vmatpush2.msra.mxu0 0.0
        %2044 = vmatprep.subr.mxu0 0.0
        %2045 = vmatpush2.msra.mxu0 0.0
        %2046 = vmatprep.subr.mxu0 0.0
        %2047 = vmatpush2.msra.mxu0 0.0
        %2048 = vmatprep.subr.mxu0 0.0
        %2049 = vmatpush2.msra.mxu0 0.0
        %2050 = vmatprep.subr.mxu0 0.0
        %2051 = vmatpush2.msra.mxu0 0.0
        %2052 = vmatprep.subr.mxu0 0.0
        %2053 = vmatpush2.msra.mxu0 0.0
        %2054 = vmatprep.subr.mxu0 0.0
        %2055 = vmatpush2.msra.mxu0 0.0
        %2056 = vmatprep.subr.mxu0 0.0
        %2057 = vmatpush2.msra.mxu0 0.0
        %2058 = vmatprep.subr.mxu0 0.0
        %2059 = vmatpush2.msra.mxu0 0.0
        %2060 = vmatprep.subr.mxu0 0.0
        %2061 = vmatpush2.msra.mxu0 0.0
        %2062 = vmatprep.subr.mxu0 0.0
        %2063 = vmatpush2.msra.mxu0 0.0
        %2064 = vmatprep.subr.mxu0 0.0
        %2065 = vmatpush2.msra.mxu0 0.0
        %2066 = vmatprep.mubr.f32.mxu0 0.0
        %2067 = vmatmul.mubr.f32.gmra.mxu0 %v1991
        %v2068 = vpop.f32.mrf.mxu0
        %v2069 = vadd.f32 0.0, %v2068
        %v2070 = vpop.f32.mrf.mxu0
        %v2071 = vadd.f32 0.0, %v2070
        %2072 = vmatprep.mubr.f32.mxu0 0.0
        %2073 = vmatmul.mubr.f32.gmra.mxu0 %v1994
        %v2074 = vpop.f32.mrf.mxu0
        %v2075 = vadd.f32 0.0, %v2074
        %v2076 = vpop.f32.mrf.mxu0
        %v2077 = vadd.f32 0.0, %v2076
        %2078 = vmatprep.mubr.f32.mxu0 0.0
        %2079 = vmatmul.mubr.f32.gmra.mxu0 %v1997
        %v2080 = vpop.f32.mrf.mxu0
        %v2081 = vadd.f32 0.0, %v2080
        %v2082 = vpop.f32.mrf.mxu0
        %v2083 = vadd.f32 0.0, %v2082
        %2084 = vmatprep.mubr.f32.mxu0 0.0
        %2085 = vmatmul.mubr.f32.gmra.mxu0 %v2000
        %v2086 = vpop.f32.mrf.mxu0
        %v2087 = vadd.f32 0.0, %v2086
        %v2088 = vpop.f32.mrf.mxu0
        %v2089 = vadd.f32 0.0, %v2088
        %2090 = vdwg.mxu0
        %2091 = vrot.lane.b32.xlu0 %v245, 32
        %v2092 = vpop.permute.xlu0 %2091
        %v2093 = vsel %vm929, %v2092, 0
        %2095 = vmatprep.subr.mxu0 0.0
        %2096 = vmatpush1.msra.mxu0 0.0
        %2097 = vmatprep.subr.mxu0 0.0
        %2098 = vmatpush1.msra.mxu0 0.0
        %2099 = vmatprep.subr.mxu0 0.0
        %2100 = vmatpush1.msra.mxu0 0.0
        %2101 = vmatprep.subr.mxu0 0.0
        %2102 = vmatpush1.msra.mxu0 0.0
        %2103 = vmatprep.subr.mxu0 0.0
        %2104 = vmatpush1.msra.mxu0 0.0
        %2105 = vmatprep.subr.mxu0 0.0
        %2106 = vmatpush1.msra.mxu0 0.0
        %2107 = vmatprep.subr.mxu0 0.0
        %2108 = vmatpush1.msra.mxu0 0.0
        %2109 = vmatprep.subr.mxu0 0.0
        %2110 = vmatpush1.msra.mxu0 0.0
        %2111 = vmatprep.subr.mxu0 0.0
        %2112 = vmatpush1.msra.mxu0 0.0
        %2113 = vmatprep.subr.mxu0 0.0
        %2114 = vmatpush1.msra.mxu0 0.0
        %2115 = vmatprep.subr.mxu0 0.0
        %2116 = vmatpush1.msra.mxu0 0.0
        %2117 = vmatprep.subr.mxu0 0.0
        %2118 = vmatpush1.msra.mxu0 0.0
        %2119 = vmatprep.subr.mxu0 %v2089
        %2120 = vmatpush1.msra.mxu0 %v2087
        %2121 = vmatprep.subr.mxu0 %v2083
        %2122 = vmatpush1.msra.mxu0 %v2081
        %2123 = vmatprep.subr.mxu0 %v2077
        %2124 = vmatpush1.msra.mxu0 %v2075
        %2125 = vmatprep.subr.mxu0 %v2071
        %2126 = vmatpush1.msra.mxu0 %v2069
        %2127 = vmatprep.subr.mxu0 0.0
        %2128 = vmatpush2.msra.mxu0 0.0
        %2129 = vmatprep.subr.mxu0 0.0
        %2130 = vmatpush2.msra.mxu0 0.0
        %2131 = vmatprep.subr.mxu0 0.0
        %2132 = vmatpush2.msra.mxu0 0.0
        %2133 = vmatprep.subr.mxu0 0.0
        %2134 = vmatpush2.msra.mxu0 0.0
        %2135 = vmatprep.subr.mxu0 0.0
        %2136 = vmatpush2.msra.mxu0 0.0
        %2137 = vmatprep.subr.mxu0 0.0
        %2138 = vmatpush2.msra.mxu0 0.0
        %2139 = vmatprep.subr.mxu0 0.0
        %2140 = vmatpush2.msra.mxu0 0.0
        %2141 = vmatprep.subr.mxu0 0.0
        %2142 = vmatpush2.msra.mxu0 0.0
        %2143 = vmatprep.subr.mxu0 0.0
        %2144 = vmatpush2.msra.mxu0 0.0
        %2145 = vmatprep.subr.mxu0 0.0
        %2146 = vmatpush2.msra.mxu0 0.0
        %2147 = vmatprep.subr.mxu0 0.0
        %2148 = vmatpush2.msra.mxu0 0.0
        %2149 = vmatprep.subr.mxu0 0.0
        %2150 = vmatpush2.msra.mxu0 0.0
        %2151 = vmatprep.subr.mxu0 0.0
        %2152 = vmatpush2.msra.mxu0 0.0
        %2153 = vmatprep.subr.mxu0 0.0
        %2154 = vmatpush2.msra.mxu0 0.0
        %2155 = vmatprep.subr.mxu0 0.0
        %2156 = vmatpush2.msra.mxu0 0.0
        %2157 = vmatprep.subr.mxu0 0.0
        %2158 = vmatpush2.msra.mxu0 0.0
        %2159 = vmatprep.mubr.f32.mxu0 0.0
        %2160 = vmatmul.mubr.f32.gmra.mxu0 %v2093
        %v2161 = vpop.f32.mrf.mxu0
        %v2162 = vadd.f32 0.0, %v2161
        %v2163 = vpop.f32.mrf.mxu0
        %v2164 = vadd.f32 0.0, %v2163
        %2165 = vdwg.mxu0
        %v2166 = vadd.f32 %v1811, %v2162
        %v2167 = vadd.f32 %v1812, %v2164
        %2169 = vset.pattern.permute.xlu0 0
        %2170 = vperm.xlu0 %2169, %v246
        %v2171 = vpop.permute.xlu0 %2170
        %v2173 = vadd.f32 %v2166, %v2171
        %v2174 = vadd.f32 %v2167, %v2171
        %v2177 = vcombine.low %v2173, %v2174
        %2179 = vst [vmem:[%s190] sm:$0xff] %v2177
        %s2180 = sand.u32 %s115, 1
        %s2181 = scalar_lea.sflag [#allocation3], %s2180
        %s2182 = sand.u32 %s115, 1
        %s2183 = smul.addr %s2182, 8
        %s2184 = scalar_lea.vmem [#allocation2], %s2183
        // Predicated region
        $region37: #{tpu_custom_call.1} parent=35 // pred_check
          %p2185 = pneg %p125
        $region38: #{tpu_custom_call.1} parent=35 // pred_check_branch
          %2187 = sbr.rel (%p2185) target = $region40
        $region39: #{tpu_custom_call.1} parent=35 // pred_region
          %s2189 = ssub.s32 128, 128
          %2190 = vsyncadd %s2181, %s2189
          %s2191 = smul.addr %s18, 2
          %s2192 = smul.addr %s2191, 64
          %s2193 = scalar_lea.hbm %s4, %s2192
          %s2195 = sshll.u32 %s2184, 4
          %s2196 = int_to_ptr.vmem [resolvable:$true] %s2195
          %2198 = dma.vmem_to_hbm [thread:$0]  %s2196, 128, %s2193, %s2181
        $region40: #{tpu_custom_call.1} parent=35 // pred_fallthru
          _
      $region36: #{tpu_custom_call.1} parent=5 // pred_fallthru
        _
      %p2199 = scmp.le.s32.totalorder 2, %s13
      // Predicated region
      $region41: #{tpu_custom_call.1} parent=5 // pred_check
        %p2200 = pneg %p2199
      $region42: #{tpu_custom_call.1} parent=5 // pred_check_branch
        %2202 = sbr.rel (%p2200) target = $region44
      $region43: #{tpu_custom_call.1} parent=5 // pred_region
        %s2203 = ssub.s32 %s13, 2
        // Predicated region
        $region45: #{tpu_custom_call.1} parent=43 // pred_check
          %p2204 = pneg %p131
        $region46: #{tpu_custom_call.1} parent=43 // pred_check_branch
          %2206 = sbr.rel (%p2204) target = $region48
        $region47: #{tpu_custom_call.1} parent=43 // pred_region
          %s2207 = sand.u32 %s116, 1
          %s2208 = scalar_lea.sflag [#allocation3], %s2207
          %s2209 = sand.u32 %s116, 1
          %s2210 = smul.addr %s2209, 8
          %s2211 = scalar_lea.vmem [#allocation2], %s2210
          %2212 = dma.done %s2208, 128
        $region48: #{tpu_custom_call.1} parent=43 // pred_fallthru
          _
      $region44: #{tpu_custom_call.1} parent=5 // pred_fallthru
        _
    $region6: #{tpu_custom_call.1} parent=1 // loop_footer
      %s17 = sadd.s32 1, %s13
    $region7: #{tpu_custom_call.1} parent=1 // loop_footer_branch
      %12 = sbr.rel target = $region3
    $region8: #{tpu_custom_call.1} parent=1 // loop_exit
      _
    %2213 = vsyncpa [#allocation3], 1
    %s2214 = scalar_lea.sflag [#allocation3], 1
    %2215 = vsyncpa %s2214, 1

</llo_original>
